<compile_context>
chip_gen: v6e
topology: v6e:2x2x1
jax: 0.10.0
libtpu: 0.0.40
codegen_flags: <defaults>
</compile_context>

<pallas_src>
import functools

import jax
import jax.numpy as jnp
from jax.experimental import pallas as pl
from jax.experimental.pallas import tpu as pltpu


# -----------------------------------------------------------------------------
# Kernel: per-plane MXU accumulation (mean folded into W1) -> softplus ->
#         fused [rgb | sigma] head -> lane-dense transposed store
# -----------------------------------------------------------------------------
def _voxel_feature_kernel(feat_ref, w1_ref, b1_ref, wh_ref, bh_ref, out_ref):
    # feat_ref : (P, TM, C)   per-plane features for TM rows (N dim squeezed)
    # w1_ref   : (C, H)       feature_linear weight (weight_gain and 1/P folded)
    # b1_ref   : (1, H)       feature_linear bias   (bias_gain folded)
    # wh_ref   : (H, Dout)    fused [rgb | sigma] head weights (std_init folded)
    # bh_ref   : (1, Dout)    fused head biases (std_init / bias_init folded)
    # out_ref  : (Dout, TM)   transposed output tile (lane-dense store)
    n_planes = feat_ref.shape[0]

    # Match weight dtype to the feature dtype (mirrors torch's w.to(x.dtype));
    # bf16 features then drive the MXU directly with f32 accumulation.
    w1 = w1_ref[...].astype(feat_ref.dtype)

    # Plane mean folded into the MXU accumulator: sum_p feat_p @ (W1 / P).
    h = jnp.dot(feat_ref[0], w1, preferred_element_type=jnp.float32)
    for p in range(1, n_planes):
        h = h + jnp.dot(feat_ref[p], w1, preferred_element_type=jnp.float32)
    h = h + b1_ref[...]

    # torch.nn.Softplus (beta=1, threshold=20 -> linear above threshold).
    h = jnp.where(h > 20.0, h, jnp.log1p(jnp.exp(jnp.minimum(h, 20.0))))

    # Fused rgb/sigma heads: rgb in columns [0, Dout-1), sigma in the last one.
    y = jnp.dot(h, wh_ref[...], preferred_element_type=jnp.float32) + bh_ref[...]

    # Transpose the narrow (TM, Dout) result so the store is lane-dense
    # (TM lanes, unmasked vst); XLU has slack here.
    out_ref[...] = y.T.astype(out_ref.dtype)


# -----------------------------------------------------------------------------
# Wrapper
# -----------------------------------------------------------------------------
@functools.partial(jax.jit, static_argnames=("tm",))
def voxel_feature_net_forward(sampled_features, params, *, tm=2048):
    """sampled_features: (N, n_planes, M, C)  (f32 or bf16)
       params: effective kernel params from prepare_kernel_params(...)
       returns (N, M, output_ch) = concat([rgb, sigma], -1)."""
    N, P, M, C = sampled_features.shape
    w1, b1 = params["w1"], params["b1"]              # (C, H), (1, H)
    wh, bh = params["w_heads"], params["b_heads"]    # (H, Dout), (1, Dout)
    H = w1.shape[1]
    Dout = wh.shape[1]
    itemsize = sampled_features.dtype.itemsize

    # Row-tile selection: multiple of 128 (tm is the lane dim of the transposed
    # output block and the MXU lhs row dim), clamped to M.  No padding of the
    # feature tensor: a partial last block is handled by Pallas masking.
    tm_req = max(128, (int(tm) // 128) * 128)
    if M >= 128:
        tm_eff = min(tm_req, (M // 128) * 128)
    else:
        tm_eff = M          # tiny-M fallback: single full-extent block
    grid = (N, pl.cdiv(M, tm_eff))

    # VMEM budget estimate (double-buffered feature + output tiles, plus
    # in-kernel f32 temporaries); capped well below v7x's 64 MiB physical VMEM.
    lane = 128
    c_pad = ((C + lane - 1) // lane) * lane
    h_pad = ((H + lane - 1) // lane) * lane
    vmem_need = (2 * P * tm_eff * c_pad * itemsize      # feature tiles
                 + 2 * 8 * tm_eff * 4                   # (Dout, TM) out tiles
                 + 4 * tm_eff * h_pad * 4               # f32 temporaries
                 + (2 << 20))                           # headroom
    vmem_limit = int(min(max(vmem_need, 32 << 20), 48 << 20))

    cost = pl.CostEstimate(
        flops=2 * N * M * P * C * H + 2 * N * M * H * Dout,
        transcendentals=2 * N * M * H,
        bytes_accessed=(N * P * M * C * itemsize
                        + N * M * Dout * 4
                        + (w1.size + b1.size + wh.size + bh.size) * 4),
    )

    out_t = pl.pallas_call(
        _voxel_feature_kernel,
        out_shape=jax.ShapeDtypeStruct((N, Dout, M), jnp.float32),
        grid_spec=pltpu.PrefetchScalarGridSpec(
            num_scalar_prefetch=0,
            grid=grid,
            in_specs=[
                # Tile the original (N, P, M, C) layout directly: no HBM copy.
                pl.BlockSpec((None, P, tm_eff, C), lambda n, i: (n, 0, i, 0)),
                pl.BlockSpec((C, H), lambda n, i: (0, 0)),       # W1 (resident)
                pl.BlockSpec((1, H), lambda n, i: (0, 0)),       # b1
                pl.BlockSpec((H, Dout), lambda n, i: (0, 0)),    # fused head W
                pl.BlockSpec((1, Dout), lambda n, i: (0, 0)),    # fused head b
            ],
            # Transposed, lane-dense output: (Dout, TM) per tile.
            out_specs=pl.BlockSpec((None, Dout, tm_eff), lambda n, i: (n, 0, i)),
        ),
        compiler_params=pltpu.CompilerParams(
            dimension_semantics=("parallel", "parallel"),
            vmem_limit_bytes=vmem_limit),
        cost_estimate=cost,
    )(sampled_features, w1, b1, wh, bh)

    # Tiny transpose back to the torch layout (N, M, Dout).
    return jnp.transpose(out_t, (0, 2, 1))


# -----------------------------------------------------------------------------
# Raw (torch-style) parameter init, mirroring VoxelFeatureNet.__init__ (D=1)
# -----------------------------------------------------------------------------
def init_voxel_feature_net_params(key, input_ch, hidden, output_ch,
                                  lr_multiplier=1.0):
    k1, k2, k3, k4, k5 = jax.random.split(key, 5)

    # FullyConnectedLayer(input_ch, hidden): weight = randn(out, in)/lr_mul,
    # bias = zeros(out); weight_gain = lr_mul/sqrt(in); bias_gain = lr_mul.
    fc_w = jax.random.normal(k1, (hidden, input_ch), jnp.float32) / lr_multiplier
    fc_b = jnp.zeros((hidden,), jnp.float32)

    # LinearLayer(..., freq_init=True).  NOTE: the torch code constructs the
    # heads with in_dim=input_ch but applies them to hidden-dim activations;
    # here the heads use fan-in = hidden (identical when input_ch == hidden).
    lim_w = float((6.0 / hidden) ** 0.5 / 25.0)
    lim_b = float((1.0 / hidden) ** 0.5)
    rgb_w = jax.random.uniform(k2, (output_ch - 1, hidden), jnp.float32,
                               -lim_w, lim_w)
    rgb_b = jax.random.uniform(k3, (output_ch - 1,), jnp.float32, -lim_b, lim_b)
    sigma_w = jax.random.uniform(k4, (1, hidden), jnp.float32, -lim_w, lim_w)
    sigma_b = jax.random.uniform(k5, (1,), jnp.float32, -lim_b, lim_b)

    return dict(fc_w=fc_w, fc_b=fc_b, rgb_w=rgb_w, rgb_b=rgb_b,
                sigma_w=sigma_w, sigma_b=sigma_b,
                lr_multiplier=float(lr_multiplier), std_init=1.0, bias_init=0.0)


def prepare_kernel_params(raw, n_planes):
    """Fold gains / std_init / bias_init / 1/n_planes and fuse the two heads."""
    lr = raw["lr_multiplier"]
    in_feat = raw["fc_w"].shape[1]
    # weight_gain = lr/sqrt(in); 1/n_planes folds the plane mean into W1.
    w1 = (raw["fc_w"] * (lr / (float(in_feat) ** 0.5) / float(n_planes))).T  # (C, H)
    b1 = (raw["fc_b"] * lr).reshape(1, -1)                                   # (1, H)
    w_heads = (jnp.concatenate([raw["rgb_w"], raw["sigma_w"]], axis=0).T
               * raw["std_init"])                                            # (H, Dout)
    b_heads = (jnp.concatenate([raw["rgb_b"], raw["sigma_b"]], axis=0)
               * raw["std_init"] + raw["bias_init"]).reshape(1, -1)          # (1, Dout)
    return dict(w1=w1, b1=b1, w_heads=w_heads, b_heads=b_heads)


# -----------------------------------------------------------------------------
# Pure-JAX reference (torch-equivalent math) for verification
# -----------------------------------------------------------------------------
def voxel_feature_net_ref(sampled_features, raw):
    lr = raw["lr_multiplier"]
    x = sampled_features.astype(jnp.float32).mean(axis=1)        # (N, M, C)
    w = raw["fc_w"] * (lr / (float(raw["fc_w"].shape[1]) ** 0.5))
    b = raw["fc_b"] * lr
    h = x @ w.T + b
    h = jnp.where(h > 20.0, h, jnp.log1p(jnp.exp(jnp.minimum(h, 20.0))))
    rgb = raw["std_init"] * (h @ raw["rgb_w"].T + raw["rgb_b"]) + raw["bias_init"]
    sdf = raw["std_init"] * (h @ raw["sigma_w"].T + raw["sigma_b"]) + raw["bias_init"]
    return jnp.concatenate([rgb, sdf], axis=-1)


if __name__ == "__main__":
    # Small shapes consistent with the module: tri-plane (3 planes),
    # input_ch = hidden = 64, output_ch = 4 (3 rgb + 1 sdf).
    N, P, M = 2, 3, 256
    input_ch = 64
    hidden = 64
    output_ch = 4

    key = jax.random.PRNGKey(0)
    k_feat, k_params, k_feat2 = jax.random.split(key, 3)

    # TODO(synk): project_onto_planes + F.grid_sample (bilinear plane texture
    # lookup) are data-dependent gathers with no clean Pallas-TPU mapping here
    # (and the torch forward calls them with missing args); the kernel starts
    # from the per-plane sampled features.
    raw = init_voxel_feature_net_params(k_params, input_ch, hidden, output_ch)
    params = prepare_kernel_params(raw, n_planes=P)

    # 1) f32 features, M divisible by the tile.
    feats = jax.random.normal(k_feat, (N, P, M, input_ch), jnp.float32)
    out = voxel_feature_net_forward(feats, params, tm=2048)
    jax.block_until_ready(out)
    ref = voxel_feature_net_ref(feats, raw)
    assert out.shape == (N, M, output_ch), out.shape
    assert jnp.allclose(out, ref, atol=1e-4, rtol=1e-4), \
        float(jnp.max(jnp.abs(out - ref)))

    # 2) Non-divisible M: exercises the partial last block (masked stores,
    #    no wrapper-side padding of the feature stream).
    M2 = 200
    feats2 = jax.random.normal(k_feat2, (N, P, M2, input_ch), jnp.float32)
    out2 = voxel_feature_net_forward(feats2, params, tm=128)
    jax.block_until_ready(out2)
    ref2 = voxel_feature_net_ref(feats2, raw)
    assert out2.shape == (N, M2, output_ch), out2.shape
    assert jnp.allclose(out2, ref2, atol=1e-4, rtol=1e-4), \
        float(jnp.max(jnp.abs(out2 - ref2)))

    # 3) bf16 feature stream (halves HBM traffic; MXU consumes bf16 directly).
    out_bf16 = voxel_feature_net_forward(feats.astype(jnp.bfloat16), params,
                                         tm=2048)
    jax.block_until_ready(out_bf16)
    assert out_bf16.shape == (N, M, output_ch), out_bf16.shape
    assert jnp.allclose(out_bf16, ref, atol=5e-2, rtol=5e-2), \
        float(jnp.max(jnp.abs(out_bf16 - ref)))

    print("KERNEL_OK")
</pallas_src>

<mosaic_0001>
module attributes {stable_mosaic.version = 11 : i64} {
  func.func @_voxel_feature_kernel(%arg0: i32, %arg1: i32, %arg2: memref<1x3x256x64xf32, #tpu.memory_space<vmem>>, %arg3: memref<64x64xf32, #tpu.memory_space<vmem>>, %arg4: memref<1x64xf32, #tpu.memory_space<vmem>>, %arg5: memref<64x4xf32, #tpu.memory_space<vmem>>, %arg6: memref<1x4xf32, #tpu.memory_space<vmem>>, %arg7: memref<1x4x256xf32, #tpu.memory_space<vmem>>) attributes {dimension_semantics = [#tpu.dimension_semantics<parallel>, #tpu.dimension_semantics<parallel>], iteration_bounds = array<i64: 2, 1>, scalar_prefetch = 0 : i64, scratch_operands = 0 : i64, tpu.core_type = #tpu.core_type<tc>, window_params = [{transform_indices = @transform_0, window_bounds = array<i64: 1, 3, 256, 64>}, {pipeline_mode = #tpu.pipeline_mode<synchronous>, transform_indices = @transform_1, window_bounds = array<i64: 64, 64>}, {pipeline_mode = #tpu.pipeline_mode<synchronous>, transform_indices = @transform_2, window_bounds = array<i64: 1, 64>}, {pipeline_mode = #tpu.pipeline_mode<synchronous>, transform_indices = @transform_3, window_bounds = array<i64: 64, 4>}, {pipeline_mode = #tpu.pipeline_mode<synchronous>, transform_indices = @transform_4, window_bounds = array<i64: 1, 4>}, {transform_indices = @transform_5, window_bounds = array<i64: 1, 4, 256>}]} {
    %c0 = arith.constant 0 : index
    %c0_0 = arith.constant 0 : index
    %0 = vector.load %arg3[%c0, %c0_0] : memref<64x64xf32, #tpu.memory_space<vmem>>, vector<64x64xf32>
    %c0_1 = arith.constant 0 : index
    %c0_2 = arith.constant 0 : index
    %c0_3 = arith.constant 0 : index
    %c0_4 = arith.constant 0 : index
    %1 = vector.load %arg2[%c0_1, %c0_2, %c0_3, %c0_4] : memref<1x3x256x64xf32, #tpu.memory_space<vmem>>, vector<1x1x256x64xf32>
    %2 = vector.shape_cast %1 : vector<1x1x256x64xf32> to vector<256x64xf32>
    %cst = arith.constant dense<0.000000e+00> : vector<256x64xf32>
    %3 = tpu.matmul %2, %0, %cst {dimension_numbers = #tpu.dot_dimension_numbers<[1], [0], [0], [1], [0, 0, 1, 1], [], []>} : vector<256x64xf32>, vector<64x64xf32>, vector<256x64xf32> -> vector<256x64xf32>
    %c0_5 = arith.constant 0 : index
    %c1 = arith.constant 1 : index
    %c0_6 = arith.constant 0 : index
    %c0_7 = arith.constant 0 : index
    %4 = vector.load %arg2[%c0_5, %c1, %c0_6, %c0_7] : memref<1x3x256x64xf32, #tpu.memory_space<vmem>>, vector<1x1x256x64xf32>
    %5 = vector.shape_cast %4 : vector<1x1x256x64xf32> to vector<256x64xf32>
    %cst_8 = arith.constant dense<0.000000e+00> : vector<256x64xf32>
    %6 = tpu.matmul %5, %0, %cst_8 {dimension_numbers = #tpu.dot_dimension_numbers<[1], [0], [0], [1], [0, 0, 1, 1], [], []>} : vector<256x64xf32>, vector<64x64xf32>, vector<256x64xf32> -> vector<256x64xf32>
    %7 = arith.addf %3, %6 : vector<256x64xf32>
    %c0_9 = arith.constant 0 : index
    %c2 = arith.constant 2 : index
    %c0_10 = arith.constant 0 : index
    %c0_11 = arith.constant 0 : index
    %8 = vector.load %arg2[%c0_9, %c2, %c0_10, %c0_11] : memref<1x3x256x64xf32, #tpu.memory_space<vmem>>, vector<1x1x256x64xf32>
    %9 = vector.shape_cast %8 : vector<1x1x256x64xf32> to vector<256x64xf32>
    %cst_12 = arith.constant dense<0.000000e+00> : vector<256x64xf32>
    %10 = tpu.matmul %9, %0, %cst_12 {dimension_numbers = #tpu.dot_dimension_numbers<[1], [0], [0], [1], [0, 0, 1, 1], [], []>} : vector<256x64xf32>, vector<64x64xf32>, vector<256x64xf32> -> vector<256x64xf32>
    %11 = arith.addf %7, %10 : vector<256x64xf32>
    %c0_13 = arith.constant 0 : index
    %c0_14 = arith.constant 0 : index
    %12 = vector.load %arg4[%c0_13, %c0_14] : memref<1x64xf32, #tpu.memory_space<vmem>>, vector<1x64xf32>
    %13 = vector.broadcast %12 : vector<1x64xf32> to vector<256x64xf32>
    %14 = arith.addf %11, %13 : vector<256x64xf32>
    %cst_15 = arith.constant 2.000000e+01 : f32
    %15 = vector.broadcast %cst_15 : f32 to vector<256x64xf32>
    %16 = arith.cmpf ogt, %14, %15 : vector<256x64xf32>
    %cst_16 = arith.constant 2.000000e+01 : f32
    %17 = vector.broadcast %cst_16 : f32 to vector<256x64xf32>
    %18 = arith.minimumf %14, %17 : vector<256x64xf32>
    %19 = math.exp %18 : vector<256x64xf32>
    %20 = math.log1p %19 : vector<256x64xf32>
    %21 = arith.select %16, %14, %20 : vector<256x64xi1>, vector<256x64xf32>
    %c0_17 = arith.constant 0 : index
    %c0_18 = arith.constant 0 : index
    %22 = vector.load %arg5[%c0_17, %c0_18] : memref<64x4xf32, #tpu.memory_space<vmem>>, vector<64x4xf32>
    %cst_19 = arith.constant dense<0.000000e+00> : vector<256x4xf32>
    %23 = tpu.matmul %21, %22, %cst_19 {dimension_numbers = #tpu.dot_dimension_numbers<[1], [0], [0], [1], [0, 0, 1, 1], [], []>} : vector<256x64xf32>, vector<64x4xf32>, vector<256x4xf32> -> vector<256x4xf32>
    %c0_20 = arith.constant 0 : index
    %c0_21 = arith.constant 0 : index
    %24 = vector.load %arg6[%c0_20, %c0_21] : memref<1x4xf32, #tpu.memory_space<vmem>>, vector<1x4xf32>
    %25 = vector.broadcast %24 : vector<1x4xf32> to vector<256x4xf32>
    %26 = arith.addf %23, %25 : vector<256x4xf32>
    %27 = tpu.transpose %26, [1, 0] : vector<256x4xf32> -> vector<4x256xf32>
    %c0_22 = arith.constant 0 : index
    %c0_23 = arith.constant 0 : index
    %c0_24 = arith.constant 0 : index
    %28 = vector.load %arg7[%c0_22, %c0_23, %c0_24] : memref<1x4x256xf32, #tpu.memory_space<vmem>>, vector<1x4x256xf32>
    %29 = vector.shape_cast %28 : vector<1x4x256xf32> to vector<4x256xf32>
    %30 = vector.shape_cast %27 : vector<4x256xf32> to vector<1x4x256xf32>
    tpu.vector_store %arg7[%c0_22, %c0_23, %c0_24], %30 {strides = array<i32>} : memref<1x4x256xf32, #tpu.memory_space<vmem>>, vector<1x4x256xf32>,
    return
  }
  func.func @transform_0(%arg0: i32, %arg1: i32) -> (i32, i32, i32, i32) {
    %c0_i32 = arith.constant 0 : i32
    %c0_i32_0 = arith.constant 0 : i32
    %c0_i32_1 = arith.constant 0 : i32
    return %arg0, %c0_i32, %arg1, %c0_i32_0 : i32, i32, i32, i32
  }
  func.func @transform_1(%arg0: i32, %arg1: i32) -> (i32, i32) {
    %c0_i32 = arith.constant 0 : i32
    %c0_i32_0 = arith.constant 0 : i32
    %c0_i32_1 = arith.constant 0 : i32
    return %c0_i32, %c0_i32_0 : i32, i32
  }
  func.func @transform_2(%arg0: i32, %arg1: i32) -> (i32, i32) {
    %c0_i32 = arith.constant 0 : i32
    %c0_i32_0 = arith.constant 0 : i32
    %c0_i32_1 = arith.constant 0 : i32
    return %c0_i32, %c0_i32_0 : i32, i32
  }
  func.func @transform_3(%arg0: i32, %arg1: i32) -> (i32, i32) {
    %c0_i32 = arith.constant 0 : i32
    %c0_i32_0 = arith.constant 0 : i32
    %c0_i32_1 = arith.constant 0 : i32
    return %c0_i32, %c0_i32_0 : i32, i32
  }
  func.func @transform_4(%arg0: i32, %arg1: i32) -> (i32, i32) {
    %c0_i32 = arith.constant 0 : i32
    %c0_i32_0 = arith.constant 0 : i32
    %c0_i32_1 = arith.constant 0 : i32
    return %c0_i32, %c0_i32_0 : i32, i32
  }
  func.func @transform_5(%arg0: i32, %arg1: i32) -> (i32, i32, i32) {
    %c0_i32 = arith.constant 0 : i32
    %c0_i32_0 = arith.constant 0 : i32
    return %arg0, %c0_i32, %arg1 : i32, i32, i32
  }
}

</mosaic_0001>

<llo_original>
// kernel: voxel_feature_net_forward.1
$region0: #{voxel_feature_net_forward.1}
  #allocation0 [shape = 'u32[]', space=smem, size = 0x4, offset = 0x4, fixed_abs, tag = 'smem constant byte address 0x4 - core index']
  #allocation1 [shape = 'u32[144,128]{1,0:T(1,128)}', space=vmem, size = 0x12000, scoped, tag = 'internal scratch']
  %s0 = inlined_call_operand.vmem [shape: f32[2,3,256,64], index: 0, kind: input, shape index: {}]
  %s1 = inlined_call_operand.vmem [shape: f32[64,64], index: 1, kind: input, shape index: {}]
  %s2 = inlined_call_operand.vmem [shape: f32[1,64], index: 2, kind: input, shape index: {}]
  %s3 = inlined_call_operand.vmem [shape: f32[64,4], index: 3, kind: input, shape index: {}]
  %s4 = inlined_call_operand.vmem [shape: f32[1,4], index: 4, kind: input, shape index: {}]
  %s5 = inlined_call_operand.hbm [shape: f32[2,4,256], index: 5, kind: output, shape index: {}]
  %s6 = sld [smem:[#allocation0]]
  $region53: #{voxel_feature_net_forward.1} parent=0
    _
  %s8 = ssub.s32 1, %s6
  %s9 = scalar_select 0, %s8, %s6
  $region1: #{voxel_feature_net_forward.1} parent=0
    #allocation2 [shape = 'u8[8192]{0}', space=vmem, size = 0x2000, scoped, tag = 'output window, operand 0']
    #allocation3 [shape = 's32[2]{0}', space=sflag, size = 0x8, scoped, tag = 'scoped memory for voxel_feature_net_forward.1']
    %10 = vsyncpa [#allocation3], 0
    %s11 = scalar_lea.sflag [#allocation3], 1
    %12 = vsyncpa %s11, 0
    loop: start=0, step=1, limit=4
    $region2: #{voxel_feature_net_forward.1} parent=1 // loop_pre_header
      _
    $region3: #{voxel_feature_net_forward.1} parent=1 // loop_header
      %s14 = sphi 0, %s18
      %p15 = scmp.ge.s32.totalorder %s14, 4
      %s21 = sphi 0, %s33
      %s22 = sphi 0, %s29
      %s23 = sphi 0, %s21
      %s24 = sphi 0, %s22
      %s25 = sphi 0, %s23
      %s26 = sphi 0, %s24
      %s38 = sphi 0, %s40
      %s41 = sphi 0, %s38
      %s42 = sphi 0, %s41
      %s58 = sphi 0, %s42
      %s62 = sphi 0, %s62
      %s64 = sphi 0, %s62
      %s65 = sphi 0, %s64
      %s79 = sphi 0, %s65
      %s83 = sphi 0, %s83
      %s85 = sphi 0, %s83
      %s86 = sphi 0, %s85
      %s100 = sphi 0, %s86
      %s104 = sphi 0, %s104
      %s106 = sphi 0, %s104
      %s107 = sphi 0, %s106
      %s121 = sphi 0, %s107
      %s125 = sphi 0, %s125
      %s127 = sphi 0, %s125
      %s128 = sphi 0, %s127
      %s142 = sphi 0, %s128
      %s150 = sphi 0, %s152
      %s153 = sphi 0, %s150
      %s154 = sphi 0, %s153
      %s170 = sphi 0, %s154
    $region4: #{voxel_feature_net_forward.1} parent=1 // loop_header_branch
      %17 = sbr.rel (%p15) target = $region8
    $region5: #{voxel_feature_net_forward.1} parent=1 // loop_body
      %s19 = ssub.s32 %s14, 1
      %s20 = ssub.s32 %s14, 2
      %s27 = sadd.s32 1, %s22
      %p28 = scmp.ge.s32.totalorder %s27, 1
      %s29 = scalar_select %p28, 0, %s27
      %s30 = sadd.s32 1, %s21
      %s31 = scalar_select %p28, %s30, %s21
      %p32 = scmp.ge.s32.totalorder %s31, 2
      %s33 = scalar_select %p32, 0, %s31
      %s34 = ssub.s32 %s21, %s33
      %s35 = ssub.s32 %s22, %s29
      %s36 = sor.u32 %s34, %s35
      %p37 = scmp.eq.s32.totalorder %s36, 0
      %s39 = sadd.s32 %s38, 1
      %s40 = scalar_select %p37, %s38, %s39
      %p43 = pneg %p37
      %p44 = scmp.eq.s32.totalorder %s14, 1
      %p45 = por %p43, %p44
      %p46 = scmp.ne.s32.totalorder %s38, %s41
      %p47 = scmp.eq.s32.totalorder %s14, 0
      %p48 = por %p46, %p47
      %p49 = scmp.ne.s32.totalorder %s38, %s41
      %p50 = scmp.eq.s32.totalorder %s19, 1
      %p51 = por %p49, %p50
      %p52 = scmp.ne.s32.totalorder %s41, %s42
      %p53 = scmp.eq.s32.totalorder %s19, 0
      %p54 = por %p52, %p53
      %p55 = scmp.ne.s32.totalorder %s41, %s42
      %p56 = scmp.eq.s32.totalorder %s20, 1
      %p57 = por %p55, %p56
      %p59 = scmp.ne.s32.totalorder %s42, %s58
      %p60 = scmp.eq.s32.totalorder %s20, 0
      %p61 = por %p59, %p60
      %s63 = sadd.s32 %s62, 1
      %p66 = scmp.eq.s32.totalorder %s14, 1
      %p67 = scmp.ne.s32.totalorder %s62, %s64
      %p68 = scmp.eq.s32.totalorder %s14, 0
      %p69 = por %p67, %p68
      %p70 = scmp.ne.s32.totalorder %s62, %s64
      %p71 = scmp.eq.s32.totalorder %s19, 1
      %p72 = por %p70, %p71
      %p73 = scmp.ne.s32.totalorder %s64, %s65
      %p74 = scmp.eq.s32.totalorder %s19, 0
      %p75 = por %p73, %p74
      %p76 = scmp.ne.s32.totalorder %s64, %s65
      %p77 = scmp.eq.s32.totalorder %s20, 1
      %p78 = por %p76, %p77
      %p80 = scmp.ne.s32.totalorder %s65, %s79
      %p81 = scmp.eq.s32.totalorder %s20, 0
      %p82 = por %p80, %p81
      %s84 = sadd.s32 %s83, 1
      %p87 = scmp.eq.s32.totalorder %s14, 1
      %p88 = scmp.ne.s32.totalorder %s83, %s85
      %p89 = scmp.eq.s32.totalorder %s14, 0
      %p90 = por %p88, %p89
      %p91 = scmp.ne.s32.totalorder %s83, %s85
      %p92 = scmp.eq.s32.totalorder %s19, 1
      %p93 = por %p91, %p92
      %p94 = scmp.ne.s32.totalorder %s85, %s86
      %p95 = scmp.eq.s32.totalorder %s19, 0
      %p96 = por %p94, %p95
      %p97 = scmp.ne.s32.totalorder %s85, %s86
      %p98 = scmp.eq.s32.totalorder %s20, 1
      %p99 = por %p97, %p98
      %p101 = scmp.ne.s32.totalorder %s86, %s100
      %p102 = scmp.eq.s32.totalorder %s20, 0
      %p103 = por %p101, %p102
      %s105 = sadd.s32 %s104, 1
      %p108 = scmp.eq.s32.totalorder %s14, 1
      %p109 = scmp.ne.s32.totalorder %s104, %s106
      %p110 = scmp.eq.s32.totalorder %s14, 0
      %p111 = por %p109, %p110
      %p112 = scmp.ne.s32.totalorder %s104, %s106
      %p113 = scmp.eq.s32.totalorder %s19, 1
      %p114 = por %p112, %p113
      %p115 = scmp.ne.s32.totalorder %s106, %s107
      %p116 = scmp.eq.s32.totalorder %s19, 0
      %p117 = por %p115, %p116
      %p118 = scmp.ne.s32.totalorder %s106, %s107
      %p119 = scmp.eq.s32.totalorder %s20, 1
      %p120 = por %p118, %p119
      %p122 = scmp.ne.s32.totalorder %s107, %s121
      %p123 = scmp.eq.s32.totalorder %s20, 0
      %p124 = por %p122, %p123
      %s126 = sadd.s32 %s125, 1
      %p129 = scmp.eq.s32.totalorder %s14, 1
      %p130 = scmp.ne.s32.totalorder %s125, %s127
      %p131 = scmp.eq.s32.totalorder %s14, 0
      %p132 = por %p130, %p131
      %p133 = scmp.ne.s32.totalorder %s125, %s127
      %p134 = scmp.eq.s32.totalorder %s19, 1
      %p135 = por %p133, %p134
      %p136 = scmp.ne.s32.totalorder %s127, %s128
      %p137 = scmp.eq.s32.totalorder %s19, 0
      %p138 = por %p136, %p137
      %p139 = scmp.ne.s32.totalorder %s127, %s128
      %p140 = scmp.eq.s32.totalorder %s20, 1
      %p141 = por %p139, %p140
      %p143 = scmp.ne.s32.totalorder %s128, %s142
      %p144 = scmp.eq.s32.totalorder %s20, 0
      %p145 = por %p143, %p144
      %s146 = ssub.s32 %s21, %s33
      %s147 = ssub.s32 %s22, %s29
      %s148 = sor.u32 %s146, %s147
      %p149 = scmp.eq.s32.totalorder %s148, 0
      %s151 = sadd.s32 %s150, 1
      %s152 = scalar_select %p149, %s150, %s151
      %p155 = pneg %p149
      %p156 = scmp.eq.s32.totalorder %s14, 1
      %p157 = por %p155, %p156
      %p158 = scmp.ne.s32.totalorder %s150, %s153
      %p159 = scmp.eq.s32.totalorder %s14, 0
      %p160 = por %p158, %p159
      %p161 = scmp.ne.s32.totalorder %s150, %s153
      %p162 = scmp.eq.s32.totalorder %s19, 1
      %p163 = por %p161, %p162
      %p164 = scmp.ne.s32.totalorder %s153, %s154
      %p165 = scmp.eq.s32.totalorder %s19, 0
      %p166 = por %p164, %p165
      %p167 = scmp.ne.s32.totalorder %s153, %s154
      %p168 = scmp.eq.s32.totalorder %s20, 1
      %p169 = por %p167, %p168
      %p171 = scmp.ne.s32.totalorder %s154, %s170
      %p172 = scmp.eq.s32.totalorder %s20, 0
      %p173 = por %p171, %p172
      %p174 = scmp.le.s32.totalorder 1, %s14
      %p175 = scmp.lt.s32.totalorder %s14, 3
      %p176 = pnand %p174, %p175
      %p177 = pneg %p176
      // Predicated region
      $region9: #{voxel_feature_net_forward.1} parent=5 // pred_check
        _
      $region10: #{voxel_feature_net_forward.1} parent=5 // pred_check_branch
        %179 = sbr.rel (%p176) target = $region12
      $region11: #{voxel_feature_net_forward.1} parent=5 // pred_region
        %s180 = ssub.s32 %s14, 1
        // Predicated region
        $region13: #{voxel_feature_net_forward.1} parent=11 // pred_check
          %p181 = pneg %p75
        $region14: #{voxel_feature_net_forward.1} parent=11 // pred_check_branch
          %183 = sbr.rel (%p181) target = $region16
        $region15: #{voxel_feature_net_forward.1} parent=11 // pred_region
          _
        $region16: #{voxel_feature_net_forward.1} parent=11 // pred_fallthru
          _
        // Predicated region
        $region17: #{voxel_feature_net_forward.1} parent=11 // pred_check
          %p184 = pneg %p96
        $region18: #{voxel_feature_net_forward.1} parent=11 // pred_check_branch
          %186 = sbr.rel (%p184) target = $region20
        $region19: #{voxel_feature_net_forward.1} parent=11 // pred_region
          _
        $region20: #{voxel_feature_net_forward.1} parent=11 // pred_fallthru
          _
        // Predicated region
        $region21: #{voxel_feature_net_forward.1} parent=11 // pred_check
          %p187 = pneg %p117
        $region22: #{voxel_feature_net_forward.1} parent=11 // pred_check_branch
          %189 = sbr.rel (%p187) target = $region24
        $region23: #{voxel_feature_net_forward.1} parent=11 // pred_region
          _
        $region24: #{voxel_feature_net_forward.1} parent=11 // pred_fallthru
          _
        // Predicated region
        $region25: #{voxel_feature_net_forward.1} parent=11 // pred_check
          %p190 = pneg %p138
        $region26: #{voxel_feature_net_forward.1} parent=11 // pred_check_branch
          %192 = sbr.rel (%p190) target = $region28
        $region27: #{voxel_feature_net_forward.1} parent=11 // pred_region
          _
        $region28: #{voxel_feature_net_forward.1} parent=11 // pred_fallthru
          _
      $region12: #{voxel_feature_net_forward.1} parent=5 // pred_fallthru
        _
      %p193 = scmp.lt.s32.totalorder %s14, 2
      // Predicated region
      $region29: #{voxel_feature_net_forward.1} parent=5 // pred_check
        %p194 = pneg %p193
      $region30: #{voxel_feature_net_forward.1} parent=5 // pred_check_branch
        %196 = sbr.rel (%p194) target = $region32
      $region31: #{voxel_feature_net_forward.1} parent=5 // pred_region
        // Predicated region
        $region33: #{voxel_feature_net_forward.1} parent=31 // pred_check
          %p197 = pneg %p48
        $region34: #{voxel_feature_net_forward.1} parent=31 // pred_check_branch
          %199 = sbr.rel (%p197) target = $region36
        $region35: #{voxel_feature_net_forward.1} parent=31 // pred_region
          %s200 = smul.u32 32, %s22
          %p201 = scmp.lt.s32.totalorder %s21, 1
          %s202 = scalar_select %p201, %s21, 1
          %p203 = scmp.lt.s32.totalorder %s200, 31
          %s204 = scalar_select %p203, %s200, 31
          %s205 = smul.addr %s202, 96
          %s206 = sadd.s32 %s204, %s205
          %s207 = smul.addr %s206, 8
          %s208 = scalar_lea.vmem %s0, %s207
          %s209 = smul.u32 32, %s22
        $region36: #{voxel_feature_net_forward.1} parent=31 // pred_fallthru
          _
      $region32: #{voxel_feature_net_forward.1} parent=5 // pred_fallthru
        _
      %p210 = scmp.le.s32.totalorder 1, %s14
      %p211 = scmp.lt.s32.totalorder %s14, 3
      %p212 = pnand %p210, %p211
      %p213 = pneg %p212
      // Predicated region
      $region37: #{voxel_feature_net_forward.1} parent=5 // pred_check
        _
      $region38: #{voxel_feature_net_forward.1} parent=5 // pred_check_branch
        %215 = sbr.rel (%p212) target = $region40
      $region39: #{voxel_feature_net_forward.1} parent=5 // pred_region
        %s216 = ssub.s32 %s14, 1
        %s217 = smul.u32 32, %s24
        %p218 = scmp.lt.s32.totalorder %s23, 1
        %s219 = scalar_select %p218, %s23, 1
        %p220 = scmp.lt.s32.totalorder %s217, 31
        %s221 = scalar_select %p220, %s217, 31
        %s222 = smul.addr %s219, 96
        %s223 = sadd.s32 %s221, %s222
        %s224 = smul.addr %s223, 8
        %s225 = scalar_lea.vmem %s0, %s224
        %p226 = pneg %p54
        %p227 = pneg %p51
        %p228 = pneg %p75
        %p229 = pneg %p72
        %p230 = pneg %p96
        %p231 = pneg %p93
        %p232 = pneg %p117
        %p233 = pneg %p114
        %p234 = pneg %p138
        %p235 = pneg %p135
        %p236 = pneg %p166
        %p237 = pneg %p163
        %s238 = sand.u32 %s153, 1
        %s239 = scalar_lea.sflag [#allocation3], %s238
        %s240 = sand.u32 %s153, 1
        %s241 = smul.addr %s240, 8
        %s242 = scalar_lea.vmem [#allocation2], %s241
        %s243 = smul.u32 32, %s24
        %p244 = scmp.lt.s32.totalorder %s23, 1
        %s245 = scalar_select %p244, %s23, 1
        %p246 = scmp.lt.s32.totalorder %s243, 31
        %s247 = scalar_select %p246, %s243, 31
        %s248 = smul.addr %s245, 96
        %s249 = sadd.s32 %s247, %s248
        %s250 = smul.addr %s249, 8
        %s251 = scalar_lea.vmem %s0, %s250
        %s252 = smul.u32 32, %s24
        %s253 = smul.u32 2, %s24
        %v254 = vld [vmem:[%s1] sm:$0xff]
        %v255 = vld [vmem:[%s1 + $0x8] sm:$0xff]
        %v256 = vld [vmem:[%s1 + $0x10] sm:$0xff]
        %v257 = vld [vmem:[%s1 + $0x18] sm:$0xff]
        %v258 = vld [vmem:[%s1 + $0x20] sm:$0xff]
        %v259 = vld [vmem:[%s1 + $0x28] sm:$0xff]
        %v260 = vld [vmem:[%s1 + $0x30] sm:$0xff]
        %v261 = vld [vmem:[%s1 + $0x38] sm:$0xff]
        %v262 = vld [vmem:[%s251] sm:$0xff]
        %v263 = vld [vmem:[%s251 + $0x8] sm:$0xff]
        %v264 = vld [vmem:[%s251 + $0x10] sm:$0xff]
        %v265 = vld [vmem:[%s251 + $0x18] sm:$0xff]
        %v266 = vld [vmem:[%s251 + $0x20] sm:$0xff]
        %v267 = vld [vmem:[%s251 + $0x28] sm:$0xff]
        %v268 = vld [vmem:[%s251 + $0x30] sm:$0xff]
        %v269 = vld [vmem:[%s251 + $0x38] sm:$0xff]
        %v270 = vld [vmem:[%s251 + $0x40] sm:$0xff]
        %v271 = vld [vmem:[%s251 + $0x48] sm:$0xff]
        %v272 = vld [vmem:[%s251 + $0x50] sm:$0xff]
        %v273 = vld [vmem:[%s251 + $0x58] sm:$0xff]
        %v274 = vld [vmem:[%s251 + $0x60] sm:$0xff]
        %v275 = vld [vmem:[%s251 + $0x68] sm:$0xff]
        %v276 = vld [vmem:[%s251 + $0x70] sm:$0xff]
        %v277 = vld [vmem:[%s251 + $0x78] sm:$0xff]
        %v278 = vld [vmem:[%s251 + $0x80] sm:$0xff]
        %v279 = vld [vmem:[%s251 + $0x88] sm:$0xff]
        %v280 = vld [vmem:[%s251 + $0x90] sm:$0xff]
        %v281 = vld [vmem:[%s251 + $0x98] sm:$0xff]
        %v282 = vld [vmem:[%s251 + $0xa0] sm:$0xff]
        %v283 = vld [vmem:[%s251 + $0xa8] sm:$0xff]
        %v284 = vld [vmem:[%s251 + $0xb0] sm:$0xff]
        %v285 = vld [vmem:[%s251 + $0xb8] sm:$0xff]
        %v286 = vld [vmem:[%s251 + $0xc0] sm:$0xff]
        %v287 = vld [vmem:[%s251 + $0xc8] sm:$0xff]
        %v288 = vld [vmem:[%s251 + $0xd0] sm:$0xff]
        %v289 = vld [vmem:[%s251 + $0xd8] sm:$0xff]
        %v290 = vld [vmem:[%s251 + $0xe0] sm:$0xff]
        %v291 = vld [vmem:[%s251 + $0xe8] sm:$0xff]
        %v292 = vld [vmem:[%s251 + $0xf0] sm:$0xff]
        %v293 = vld [vmem:[%s251 + $0xf8] sm:$0xff]
        %s294 = scalar_lea.vmem %s251, 256
        %v295 = vld [vmem:[%s294] sm:$0xff]
        %v296 = vld [vmem:[%s294 + $0x8] sm:$0xff]
        %v297 = vld [vmem:[%s294 + $0x10] sm:$0xff]
        %v298 = vld [vmem:[%s294 + $0x18] sm:$0xff]
        %v299 = vld [vmem:[%s294 + $0x20] sm:$0xff]
        %v300 = vld [vmem:[%s294 + $0x28] sm:$0xff]
        %v301 = vld [vmem:[%s294 + $0x30] sm:$0xff]
        %v302 = vld [vmem:[%s294 + $0x38] sm:$0xff]
        %v303 = vld [vmem:[%s294 + $0x40] sm:$0xff]
        %v304 = vld [vmem:[%s294 + $0x48] sm:$0xff]
        %v305 = vld [vmem:[%s294 + $0x50] sm:$0xff]
        %v306 = vld [vmem:[%s294 + $0x58] sm:$0xff]
        %v307 = vld [vmem:[%s294 + $0x60] sm:$0xff]
        %v308 = vld [vmem:[%s294 + $0x68] sm:$0xff]
        %v309 = vld [vmem:[%s294 + $0x70] sm:$0xff]
        %v310 = vld [vmem:[%s294 + $0x78] sm:$0xff]
        %v311 = vld [vmem:[%s294 + $0x80] sm:$0xff]
        %v312 = vld [vmem:[%s294 + $0x88] sm:$0xff]
        %v313 = vld [vmem:[%s294 + $0x90] sm:$0xff]
        %v314 = vld [vmem:[%s294 + $0x98] sm:$0xff]
        %v315 = vld [vmem:[%s294 + $0xa0] sm:$0xff]
        %v316 = vld [vmem:[%s294 + $0xa8] sm:$0xff]
        %v317 = vld [vmem:[%s294 + $0xb0] sm:$0xff]
        %v318 = vld [vmem:[%s294 + $0xb8] sm:$0xff]
        %v319 = vld [vmem:[%s294 + $0xc0] sm:$0xff]
        %v320 = vld [vmem:[%s294 + $0xc8] sm:$0xff]
        %v321 = vld [vmem:[%s294 + $0xd0] sm:$0xff]
        %v322 = vld [vmem:[%s294 + $0xd8] sm:$0xff]
        %v323 = vld [vmem:[%s294 + $0xe0] sm:$0xff]
        %v324 = vld [vmem:[%s294 + $0xe8] sm:$0xff]
        %v325 = vld [vmem:[%s294 + $0xf0] sm:$0xff]
        %v326 = vld [vmem:[%s294 + $0xf8] sm:$0xff]
        %vm327 = vcmask 523264
        %v329 = vsel %vm327, %v295, 0
        %v332 = vsel %vm327, %v296, 0
        %v335 = vsel %vm327, %v297, 0
        %v338 = vsel %vm327, %v298, 0
        %v341 = vsel %vm327, %v299, 0
        %v344 = vsel %vm327, %v300, 0
        %v347 = vsel %vm327, %v301, 0
        %v350 = vsel %vm327, %v302, 0
        %v353 = vsel %vm327, %v303, 0
        %v356 = vsel %vm327, %v304, 0
        %v359 = vsel %vm327, %v305, 0
        %v362 = vsel %vm327, %v306, 0
        %v365 = vsel %vm327, %v307, 0
        %v368 = vsel %vm327, %v308, 0
        %v371 = vsel %vm327, %v309, 0
        %v374 = vsel %vm327, %v310, 0
        %v377 = vsel %vm327, %v311, 0
        %v380 = vsel %vm327, %v312, 0
        %v383 = vsel %vm327, %v313, 0
        %v386 = vsel %vm327, %v314, 0
        %v389 = vsel %vm327, %v315, 0
        %v392 = vsel %vm327, %v316, 0
        %v395 = vsel %vm327, %v317, 0
        %v398 = vsel %vm327, %v318, 0
        %v401 = vsel %vm327, %v319, 0
        %v404 = vsel %vm327, %v320, 0
        %v407 = vsel %vm327, %v321, 0
        %v410 = vsel %vm327, %v322, 0
        %v413 = vsel %vm327, %v323, 0
        %v416 = vsel %vm327, %v324, 0
        %v419 = vsel %vm327, %v325, 0
        %v422 = vsel %vm327, %v326, 0
        %424 = vmatprep.subr.mxu0 0.0
        %425 = vmatpush1.msra.mxu0 0.0
        %426 = vmatprep.subr.mxu0 0.0
        %427 = vmatpush1.msra.mxu0 0.0
        %428 = vmatprep.subr.mxu0 0.0
        %429 = vmatpush1.msra.mxu0 0.0
        %430 = vmatprep.subr.mxu0 0.0
        %431 = vmatpush1.msra.mxu0 0.0
        %432 = vmatprep.subr.mxu0 0.0
        %433 = vmatpush1.msra.mxu0 0.0
        %434 = vmatprep.subr.mxu0 0.0
        %435 = vmatpush1.msra.mxu0 0.0
        %436 = vmatprep.subr.mxu0 0.0
        %437 = vmatpush1.msra.mxu0 0.0
        %438 = vmatprep.subr.mxu0 0.0
        %439 = vmatpush1.msra.mxu0 0.0
        %440 = vmatprep.subr.mxu0 0.0
        %441 = vmatpush1.msra.mxu0 %v261
        %442 = vmatprep.subr.mxu0 0.0
        %443 = vmatpush1.msra.mxu0 %v260
        %444 = vmatprep.subr.mxu0 0.0
        %445 = vmatpush1.msra.mxu0 %v259
        %446 = vmatprep.subr.mxu0 0.0
        %447 = vmatpush1.msra.mxu0 %v258
        %448 = vmatprep.subr.mxu0 0.0
        %449 = vmatpush1.msra.mxu0 %v257
        %450 = vmatprep.subr.mxu0 0.0
        %451 = vmatpush1.msra.mxu0 %v256
        %452 = vmatprep.subr.mxu0 0.0
        %453 = vmatpush1.msra.mxu0 %v255
        %454 = vmatprep.subr.mxu0 0.0
        %455 = vmatpush1.msra.mxu0 %v254
        %456 = vmatprep.subr.mxu0 0.0
        %457 = vmatpush2.msra.mxu0 0.0
        %458 = vmatprep.subr.mxu0 0.0
        %459 = vmatpush2.msra.mxu0 0.0
        %460 = vmatprep.subr.mxu0 0.0
        %461 = vmatpush2.msra.mxu0 0.0
        %462 = vmatprep.subr.mxu0 0.0
        %463 = vmatpush2.msra.mxu0 0.0
        %464 = vmatprep.subr.mxu0 0.0
        %465 = vmatpush2.msra.mxu0 0.0
        %466 = vmatprep.subr.mxu0 0.0
        %467 = vmatpush2.msra.mxu0 0.0
        %468 = vmatprep.subr.mxu0 0.0
        %469 = vmatpush2.msra.mxu0 0.0
        %470 = vmatprep.subr.mxu0 0.0
        %471 = vmatpush2.msra.mxu0 0.0
        %472 = vmatprep.subr.mxu0 0.0
        %473 = vmatpush2.msra.mxu0 0.0
        %474 = vmatprep.subr.mxu0 0.0
        %475 = vmatpush2.msra.mxu0 0.0
        %476 = vmatprep.subr.mxu0 0.0
        %477 = vmatpush2.msra.mxu0 0.0
        %478 = vmatprep.subr.mxu0 0.0
        %479 = vmatpush2.msra.mxu0 0.0
        %480 = vmatprep.subr.mxu0 0.0
        %481 = vmatpush2.msra.mxu0 0.0
        %482 = vmatprep.subr.mxu0 0.0
        %483 = vmatpush2.msra.mxu0 0.0
        %484 = vmatprep.subr.mxu0 0.0
        %485 = vmatpush2.msra.mxu0 0.0
        %486 = vmatprep.subr.mxu0 0.0
        %487 = vmatpush2.msra.mxu0 0.0
        %488 = vmatprep.mubr.f32.mxu0 0.0
        %489 = vmatmul.mubr.f32.gmra.mxu0 %v329
        %v490 = vpop.f32.mrf.mxu0
        %v491 = vadd.f32 0.0, %v490
        %v492 = vpop.f32.mrf.mxu0
        %493 = vmatprep.mubr.f32.mxu0 0.0
        %494 = vmatmul.mubr.f32.gmra.mxu0 %v332
        %v495 = vpop.f32.mrf.mxu0
        %v496 = vadd.f32 0.0, %v495
        %v497 = vpop.f32.mrf.mxu0
        %498 = vmatprep.mubr.f32.mxu0 0.0
        %499 = vmatmul.mubr.f32.gmra.mxu0 %v335
        %v500 = vpop.f32.mrf.mxu0
        %v501 = vadd.f32 0.0, %v500
        %v502 = vpop.f32.mrf.mxu0
        %503 = vmatprep.mubr.f32.mxu0 0.0
        %504 = vmatmul.mubr.f32.gmra.mxu0 %v338
        %v505 = vpop.f32.mrf.mxu0
        %v506 = vadd.f32 0.0, %v505
        %v507 = vpop.f32.mrf.mxu0
        %508 = vmatprep.mubr.f32.mxu0 0.0
        %509 = vmatmul.mubr.f32.gmra.mxu0 %v341
        %v510 = vpop.f32.mrf.mxu0
        %v511 = vadd.f32 0.0, %v510
        %v512 = vpop.f32.mrf.mxu0
        %513 = vmatprep.mubr.f32.mxu0 0.0
        %514 = vmatmul.mubr.f32.gmra.mxu0 %v344
        %v515 = vpop.f32.mrf.mxu0
        %v516 = vadd.f32 0.0, %v515
        %v517 = vpop.f32.mrf.mxu0
        %518 = vmatprep.mubr.f32.mxu0 0.0
        %519 = vmatmul.mubr.f32.gmra.mxu0 %v347
        %v520 = vpop.f32.mrf.mxu0
        %v521 = vadd.f32 0.0, %v520
        %v522 = vpop.f32.mrf.mxu0
        %523 = vmatprep.mubr.f32.mxu0 0.0
        %524 = vmatmul.mubr.f32.gmra.mxu0 %v350
        %v525 = vpop.f32.mrf.mxu0
        %v526 = vadd.f32 0.0, %v525
        %v527 = vpop.f32.mrf.mxu0
        %528 = vmatprep.mubr.f32.mxu0 0.0
        %529 = vmatmul.mubr.f32.gmra.mxu0 %v353
        %v530 = vpop.f32.mrf.mxu0
        %v531 = vadd.f32 0.0, %v530
        %v532 = vpop.f32.mrf.mxu0
        %533 = vmatprep.mubr.f32.mxu0 0.0
        %534 = vmatmul.mubr.f32.gmra.mxu0 %v356
        %v535 = vpop.f32.mrf.mxu0
        %v536 = vadd.f32 0.0, %v535
        %v537 = vpop.f32.mrf.mxu0
        %538 = vmatprep.mubr.f32.mxu0 0.0
        %539 = vmatmul.mubr.f32.gmra.mxu0 %v359
        %v540 = vpop.f32.mrf.mxu0
        %v541 = vadd.f32 0.0, %v540
        %v542 = vpop.f32.mrf.mxu0
        %543 = vmatprep.mubr.f32.mxu0 0.0
        %544 = vmatmul.mubr.f32.gmra.mxu0 %v362
        %v545 = vpop.f32.mrf.mxu0
        %v546 = vadd.f32 0.0, %v545
        %v547 = vpop.f32.mrf.mxu0
        %548 = vmatprep.mubr.f32.mxu0 0.0
        %549 = vmatmul.mubr.f32.gmra.mxu0 %v365
        %v550 = vpop.f32.mrf.mxu0
        %v551 = vadd.f32 0.0, %v550
        %v552 = vpop.f32.mrf.mxu0
        %553 = vmatprep.mubr.f32.mxu0 0.0
        %554 = vmatmul.mubr.f32.gmra.mxu0 %v368
        %v555 = vpop.f32.mrf.mxu0
        %v556 = vadd.f32 0.0, %v555
        %v557 = vpop.f32.mrf.mxu0
        %558 = vmatprep.mubr.f32.mxu0 0.0
        %559 = vmatmul.mubr.f32.gmra.mxu0 %v371
        %v560 = vpop.f32.mrf.mxu0
        %v561 = vadd.f32 0.0, %v560
        %v562 = vpop.f32.mrf.mxu0
        %563 = vmatprep.mubr.f32.mxu0 0.0
        %564 = vmatmul.mubr.f32.gmra.mxu0 %v374
        %v565 = vpop.f32.mrf.mxu0
        %v566 = vadd.f32 0.0, %v565
        %v567 = vpop.f32.mrf.mxu0
        %568 = vmatprep.mubr.f32.mxu0 0.0
        %569 = vmatmul.mubr.f32.gmra.mxu0 %v377
        %v570 = vpop.f32.mrf.mxu0
        %v571 = vadd.f32 0.0, %v570
        %v572 = vpop.f32.mrf.mxu0
        %573 = vmatprep.mubr.f32.mxu0 0.0
        %574 = vmatmul.mubr.f32.gmra.mxu0 %v380
        %v575 = vpop.f32.mrf.mxu0
        %v576 = vadd.f32 0.0, %v575
        %v577 = vpop.f32.mrf.mxu0
        %578 = vmatprep.mubr.f32.mxu0 0.0
        %579 = vmatmul.mubr.f32.gmra.mxu0 %v383
        %v580 = vpop.f32.mrf.mxu0
        %v581 = vadd.f32 0.0, %v580
        %v582 = vpop.f32.mrf.mxu0
        %583 = vmatprep.mubr.f32.mxu0 0.0
        %584 = vmatmul.mubr.f32.gmra.mxu0 %v386
        %v585 = vpop.f32.mrf.mxu0
        %v586 = vadd.f32 0.0, %v585
        %v587 = vpop.f32.mrf.mxu0
        %588 = vmatprep.mubr.f32.mxu0 0.0
        %589 = vmatmul.mubr.f32.gmra.mxu0 %v389
        %v590 = vpop.f32.mrf.mxu0
        %v591 = vadd.f32 0.0, %v590
        %v592 = vpop.f32.mrf.mxu0
        %593 = vmatprep.mubr.f32.mxu0 0.0
        %594 = vmatmul.mubr.f32.gmra.mxu0 %v392
        %v595 = vpop.f32.mrf.mxu0
        %v596 = vadd.f32 0.0, %v595
        %v597 = vpop.f32.mrf.mxu0
        %598 = vmatprep.mubr.f32.mxu0 0.0
        %599 = vmatmul.mubr.f32.gmra.mxu0 %v395
        %v600 = vpop.f32.mrf.mxu0
        %v601 = vadd.f32 0.0, %v600
        %v602 = vpop.f32.mrf.mxu0
        %603 = vmatprep.mubr.f32.mxu0 0.0
        %604 = vmatmul.mubr.f32.gmra.mxu0 %v398
        %v605 = vpop.f32.mrf.mxu0
        %v606 = vadd.f32 0.0, %v605
        %v607 = vpop.f32.mrf.mxu0
        %608 = vmatprep.mubr.f32.mxu0 0.0
        %609 = vmatmul.mubr.f32.gmra.mxu0 %v401
        %v610 = vpop.f32.mrf.mxu0
        %v611 = vadd.f32 0.0, %v610
        %v612 = vpop.f32.mrf.mxu0
        %613 = vmatprep.mubr.f32.mxu0 0.0
        %614 = vmatmul.mubr.f32.gmra.mxu0 %v404
        %v615 = vpop.f32.mrf.mxu0
        %v616 = vadd.f32 0.0, %v615
        %v617 = vpop.f32.mrf.mxu0
        %618 = vmatprep.mubr.f32.mxu0 0.0
        %619 = vmatmul.mubr.f32.gmra.mxu0 %v407
        %v620 = vpop.f32.mrf.mxu0
        %v621 = vadd.f32 0.0, %v620
        %v622 = vpop.f32.mrf.mxu0
        %623 = vmatprep.mubr.f32.mxu0 0.0
        %624 = vmatmul.mubr.f32.gmra.mxu0 %v410
        %v625 = vpop.f32.mrf.mxu0
        %v626 = vadd.f32 0.0, %v625
        %v627 = vpop.f32.mrf.mxu0
        %628 = vmatprep.mubr.f32.mxu0 0.0
        %629 = vmatmul.mubr.f32.gmra.mxu0 %v413
        %v630 = vpop.f32.mrf.mxu0
        %v631 = vadd.f32 0.0, %v630
        %v632 = vpop.f32.mrf.mxu0
        %633 = vmatprep.mubr.f32.mxu0 0.0
        %634 = vmatmul.mubr.f32.gmra.mxu0 %v416
        %v635 = vpop.f32.mrf.mxu0
        %v636 = vadd.f32 0.0, %v635
        %v637 = vpop.f32.mrf.mxu0
        %638 = vmatprep.mubr.f32.mxu0 0.0
        %639 = vmatmul.mubr.f32.gmra.mxu0 %v419
        %v640 = vpop.f32.mrf.mxu0
        %v641 = vadd.f32 0.0, %v640
        %v642 = vpop.f32.mrf.mxu0
        %643 = vmatprep.mubr.f32.mxu0 0.0
        %644 = vmatmul.mubr.f32.gmra.mxu0 %v422
        %v645 = vpop.f32.mrf.mxu0
        %v646 = vadd.f32 0.0, %v645
        %v647 = vpop.f32.mrf.mxu0
        %648 = vdwg.mxu0
        %v650 = vsel %vm327, %v262, 0
        %v653 = vsel %vm327, %v263, 0
        %v656 = vsel %vm327, %v264, 0
        %v659 = vsel %vm327, %v265, 0
        %v662 = vsel %vm327, %v266, 0
        %v665 = vsel %vm327, %v267, 0
        %v668 = vsel %vm327, %v268, 0
        %v671 = vsel %vm327, %v269, 0
        %v674 = vsel %vm327, %v270, 0
        %v677 = vsel %vm327, %v271, 0
        %v680 = vsel %vm327, %v272, 0
        %v683 = vsel %vm327, %v273, 0
        %v686 = vsel %vm327, %v274, 0
        %v689 = vsel %vm327, %v275, 0
        %v692 = vsel %vm327, %v276, 0
        %v695 = vsel %vm327, %v277, 0
        %v698 = vsel %vm327, %v278, 0
        %v701 = vsel %vm327, %v279, 0
        %v704 = vsel %vm327, %v280, 0
        %v707 = vsel %vm327, %v281, 0
        %v710 = vsel %vm327, %v282, 0
        %v713 = vsel %vm327, %v283, 0
        %v716 = vsel %vm327, %v284, 0
        %v719 = vsel %vm327, %v285, 0
        %v722 = vsel %vm327, %v286, 0
        %v725 = vsel %vm327, %v287, 0
        %v728 = vsel %vm327, %v288, 0
        %v731 = vsel %vm327, %v289, 0
        %v734 = vsel %vm327, %v290, 0
        %v737 = vsel %vm327, %v291, 0
        %v740 = vsel %vm327, %v292, 0
        %v743 = vsel %vm327, %v293, 0
        %745 = vmatprep.subr.mxu0 0.0
        %746 = vmatpush1.msra.mxu0 0.0
        %747 = vmatprep.subr.mxu0 0.0
        %748 = vmatpush1.msra.mxu0 0.0
        %749 = vmatprep.subr.mxu0 0.0
        %750 = vmatpush1.msra.mxu0 0.0
        %751 = vmatprep.subr.mxu0 0.0
        %752 = vmatpush1.msra.mxu0 0.0
        %753 = vmatprep.subr.mxu0 0.0
        %754 = vmatpush1.msra.mxu0 0.0
        %755 = vmatprep.subr.mxu0 0.0
        %756 = vmatpush1.msra.mxu0 0.0
        %757 = vmatprep.subr.mxu0 0.0
        %758 = vmatpush1.msra.mxu0 0.0
        %759 = vmatprep.subr.mxu0 0.0
        %760 = vmatpush1.msra.mxu0 0.0
        %761 = vmatprep.subr.mxu0 0.0
        %762 = vmatpush1.msra.mxu0 %v261
        %763 = vmatprep.subr.mxu0 0.0
        %764 = vmatpush1.msra.mxu0 %v260
        %765 = vmatprep.subr.mxu0 0.0
        %766 = vmatpush1.msra.mxu0 %v259
        %767 = vmatprep.subr.mxu0 0.0
        %768 = vmatpush1.msra.mxu0 %v258
        %769 = vmatprep.subr.mxu0 0.0
        %770 = vmatpush1.msra.mxu0 %v257
        %771 = vmatprep.subr.mxu0 0.0
        %772 = vmatpush1.msra.mxu0 %v256
        %773 = vmatprep.subr.mxu0 0.0
        %774 = vmatpush1.msra.mxu0 %v255
        %775 = vmatprep.subr.mxu0 0.0
        %776 = vmatpush1.msra.mxu0 %v254
        %777 = vmatprep.subr.mxu0 0.0
        %778 = vmatpush2.msra.mxu0 0.0
        %779 = vmatprep.subr.mxu0 0.0
        %780 = vmatpush2.msra.mxu0 0.0
        %781 = vmatprep.subr.mxu0 0.0
        %782 = vmatpush2.msra.mxu0 0.0
        %783 = vmatprep.subr.mxu0 0.0
        %784 = vmatpush2.msra.mxu0 0.0
        %785 = vmatprep.subr.mxu0 0.0
        %786 = vmatpush2.msra.mxu0 0.0
        %787 = vmatprep.subr.mxu0 0.0
        %788 = vmatpush2.msra.mxu0 0.0
        %789 = vmatprep.subr.mxu0 0.0
        %790 = vmatpush2.msra.mxu0 0.0
        %791 = vmatprep.subr.mxu0 0.0
        %792 = vmatpush2.msra.mxu0 0.0
        %793 = vmatprep.subr.mxu0 0.0
        %794 = vmatpush2.msra.mxu0 0.0
        %795 = vmatprep.subr.mxu0 0.0
        %796 = vmatpush2.msra.mxu0 0.0
        %797 = vmatprep.subr.mxu0 0.0
        %798 = vmatpush2.msra.mxu0 0.0
        %799 = vmatprep.subr.mxu0 0.0
        %800 = vmatpush2.msra.mxu0 0.0
        %801 = vmatprep.subr.mxu0 0.0
        %802 = vmatpush2.msra.mxu0 0.0
        %803 = vmatprep.subr.mxu0 0.0
        %804 = vmatpush2.msra.mxu0 0.0
        %805 = vmatprep.subr.mxu0 0.0
        %806 = vmatpush2.msra.mxu0 0.0
        %807 = vmatprep.subr.mxu0 0.0
        %808 = vmatpush2.msra.mxu0 0.0
        %809 = vmatprep.mubr.f32.mxu0 0.0
        %810 = vmatmul.mubr.f32.gmra.mxu0 %v650
        %v811 = vpop.f32.mrf.mxu0
        %v812 = vadd.f32 %v491, %v811
        %v813 = vpop.f32.mrf.mxu0
        %814 = vmatprep.mubr.f32.mxu0 0.0
        %815 = vmatmul.mubr.f32.gmra.mxu0 %v653
        %v816 = vpop.f32.mrf.mxu0
        %v817 = vadd.f32 %v496, %v816
        %v818 = vpop.f32.mrf.mxu0
        %819 = vmatprep.mubr.f32.mxu0 0.0
        %820 = vmatmul.mubr.f32.gmra.mxu0 %v656
        %v821 = vpop.f32.mrf.mxu0
        %v822 = vadd.f32 %v501, %v821
        %v823 = vpop.f32.mrf.mxu0
        %824 = vmatprep.mubr.f32.mxu0 0.0
        %825 = vmatmul.mubr.f32.gmra.mxu0 %v659
        %v826 = vpop.f32.mrf.mxu0
        %v827 = vadd.f32 %v506, %v826
        %v828 = vpop.f32.mrf.mxu0
        %829 = vmatprep.mubr.f32.mxu0 0.0
        %830 = vmatmul.mubr.f32.gmra.mxu0 %v662
        %v831 = vpop.f32.mrf.mxu0
        %v832 = vadd.f32 %v511, %v831
        %v833 = vpop.f32.mrf.mxu0
        %834 = vmatprep.mubr.f32.mxu0 0.0
        %835 = vmatmul.mubr.f32.gmra.mxu0 %v665
        %v836 = vpop.f32.mrf.mxu0
        %v837 = vadd.f32 %v516, %v836
        %v838 = vpop.f32.mrf.mxu0
        %839 = vmatprep.mubr.f32.mxu0 0.0
        %840 = vmatmul.mubr.f32.gmra.mxu0 %v668
        %v841 = vpop.f32.mrf.mxu0
        %v842 = vadd.f32 %v521, %v841
        %v843 = vpop.f32.mrf.mxu0
        %844 = vmatprep.mubr.f32.mxu0 0.0
        %845 = vmatmul.mubr.f32.gmra.mxu0 %v671
        %v846 = vpop.f32.mrf.mxu0
        %v847 = vadd.f32 %v526, %v846
        %v848 = vpop.f32.mrf.mxu0
        %849 = vmatprep.mubr.f32.mxu0 0.0
        %850 = vmatmul.mubr.f32.gmra.mxu0 %v674
        %v851 = vpop.f32.mrf.mxu0
        %v852 = vadd.f32 %v531, %v851
        %v853 = vpop.f32.mrf.mxu0
        %854 = vmatprep.mubr.f32.mxu0 0.0
        %855 = vmatmul.mubr.f32.gmra.mxu0 %v677
        %v856 = vpop.f32.mrf.mxu0
        %v857 = vadd.f32 %v536, %v856
        %v858 = vpop.f32.mrf.mxu0
        %859 = vmatprep.mubr.f32.mxu0 0.0
        %860 = vmatmul.mubr.f32.gmra.mxu0 %v680
        %v861 = vpop.f32.mrf.mxu0
        %v862 = vadd.f32 %v541, %v861
        %v863 = vpop.f32.mrf.mxu0
        %864 = vmatprep.mubr.f32.mxu0 0.0
        %865 = vmatmul.mubr.f32.gmra.mxu0 %v683
        %v866 = vpop.f32.mrf.mxu0
        %v867 = vadd.f32 %v546, %v866
        %v868 = vpop.f32.mrf.mxu0
        %869 = vmatprep.mubr.f32.mxu0 0.0
        %870 = vmatmul.mubr.f32.gmra.mxu0 %v686
        %v871 = vpop.f32.mrf.mxu0
        %v872 = vadd.f32 %v551, %v871
        %v873 = vpop.f32.mrf.mxu0
        %874 = vmatprep.mubr.f32.mxu0 0.0
        %875 = vmatmul.mubr.f32.gmra.mxu0 %v689
        %v876 = vpop.f32.mrf.mxu0
        %v877 = vadd.f32 %v556, %v876
        %v878 = vpop.f32.mrf.mxu0
        %879 = vmatprep.mubr.f32.mxu0 0.0
        %880 = vmatmul.mubr.f32.gmra.mxu0 %v692
        %v881 = vpop.f32.mrf.mxu0
        %v882 = vadd.f32 %v561, %v881
        %v883 = vpop.f32.mrf.mxu0
        %884 = vmatprep.mubr.f32.mxu0 0.0
        %885 = vmatmul.mubr.f32.gmra.mxu0 %v695
        %v886 = vpop.f32.mrf.mxu0
        %v887 = vadd.f32 %v566, %v886
        %v888 = vpop.f32.mrf.mxu0
        %889 = vmatprep.mubr.f32.mxu0 0.0
        %890 = vmatmul.mubr.f32.gmra.mxu0 %v698
        %v891 = vpop.f32.mrf.mxu0
        %v892 = vadd.f32 %v571, %v891
        %v893 = vpop.f32.mrf.mxu0
        %894 = vmatprep.mubr.f32.mxu0 0.0
        %895 = vmatmul.mubr.f32.gmra.mxu0 %v701
        %v896 = vpop.f32.mrf.mxu0
        %v897 = vadd.f32 %v576, %v896
        %v898 = vpop.f32.mrf.mxu0
        %899 = vmatprep.mubr.f32.mxu0 0.0
        %900 = vmatmul.mubr.f32.gmra.mxu0 %v704
        %v901 = vpop.f32.mrf.mxu0
        %v902 = vadd.f32 %v581, %v901
        %v903 = vpop.f32.mrf.mxu0
        %904 = vmatprep.mubr.f32.mxu0 0.0
        %905 = vmatmul.mubr.f32.gmra.mxu0 %v707
        %v906 = vpop.f32.mrf.mxu0
        %v907 = vadd.f32 %v586, %v906
        %v908 = vpop.f32.mrf.mxu0
        %909 = vmatprep.mubr.f32.mxu0 0.0
        %910 = vmatmul.mubr.f32.gmra.mxu0 %v710
        %v911 = vpop.f32.mrf.mxu0
        %v912 = vadd.f32 %v591, %v911
        %v913 = vpop.f32.mrf.mxu0
        %914 = vmatprep.mubr.f32.mxu0 0.0
        %915 = vmatmul.mubr.f32.gmra.mxu0 %v713
        %v916 = vpop.f32.mrf.mxu0
        %v917 = vadd.f32 %v596, %v916
        %v918 = vpop.f32.mrf.mxu0
        %919 = vmatprep.mubr.f32.mxu0 0.0
        %920 = vmatmul.mubr.f32.gmra.mxu0 %v716
        %v921 = vpop.f32.mrf.mxu0
        %v922 = vadd.f32 %v601, %v921
        %v923 = vpop.f32.mrf.mxu0
        %924 = vmatprep.mubr.f32.mxu0 0.0
        %925 = vmatmul.mubr.f32.gmra.mxu0 %v719
        %v926 = vpop.f32.mrf.mxu0
        %v927 = vadd.f32 %v606, %v926
        %v928 = vpop.f32.mrf.mxu0
        %929 = vmatprep.mubr.f32.mxu0 0.0
        %930 = vmatmul.mubr.f32.gmra.mxu0 %v722
        %v931 = vpop.f32.mrf.mxu0
        %v932 = vadd.f32 %v611, %v931
        %v933 = vpop.f32.mrf.mxu0
        %934 = vmatprep.mubr.f32.mxu0 0.0
        %935 = vmatmul.mubr.f32.gmra.mxu0 %v725
        %v936 = vpop.f32.mrf.mxu0
        %v937 = vadd.f32 %v616, %v936
        %v938 = vpop.f32.mrf.mxu0
        %939 = vmatprep.mubr.f32.mxu0 0.0
        %940 = vmatmul.mubr.f32.gmra.mxu0 %v728
        %v941 = vpop.f32.mrf.mxu0
        %v942 = vadd.f32 %v621, %v941
        %v943 = vpop.f32.mrf.mxu0
        %944 = vmatprep.mubr.f32.mxu0 0.0
        %945 = vmatmul.mubr.f32.gmra.mxu0 %v731
        %v946 = vpop.f32.mrf.mxu0
        %v947 = vadd.f32 %v626, %v946
        %v948 = vpop.f32.mrf.mxu0
        %949 = vmatprep.mubr.f32.mxu0 0.0
        %950 = vmatmul.mubr.f32.gmra.mxu0 %v734
        %v951 = vpop.f32.mrf.mxu0
        %v952 = vadd.f32 %v631, %v951
        %v953 = vpop.f32.mrf.mxu0
        %954 = vmatprep.mubr.f32.mxu0 0.0
        %955 = vmatmul.mubr.f32.gmra.mxu0 %v737
        %v956 = vpop.f32.mrf.mxu0
        %v957 = vadd.f32 %v636, %v956
        %v958 = vpop.f32.mrf.mxu0
        %959 = vmatprep.mubr.f32.mxu0 0.0
        %960 = vmatmul.mubr.f32.gmra.mxu0 %v740
        %v961 = vpop.f32.mrf.mxu0
        %v962 = vadd.f32 %v641, %v961
        %v963 = vpop.f32.mrf.mxu0
        %964 = vmatprep.mubr.f32.mxu0 0.0
        %965 = vmatmul.mubr.f32.gmra.mxu0 %v743
        %v966 = vpop.f32.mrf.mxu0
        %v967 = vadd.f32 %v646, %v966
        %v968 = vpop.f32.mrf.mxu0
        %969 = vdwg.mxu0
        %s970 = scalar_lea.vmem %s251, 512
        %v971 = vld [vmem:[%s970] sm:$0xff]
        %v972 = vld [vmem:[%s970 + $0x8] sm:$0xff]
        %v973 = vld [vmem:[%s970 + $0x10] sm:$0xff]
        %v974 = vld [vmem:[%s970 + $0x18] sm:$0xff]
        %v975 = vld [vmem:[%s970 + $0x20] sm:$0xff]
        %v976 = vld [vmem:[%s970 + $0x28] sm:$0xff]
        %v977 = vld [vmem:[%s970 + $0x30] sm:$0xff]
        %v978 = vld [vmem:[%s970 + $0x38] sm:$0xff]
        %v979 = vld [vmem:[%s970 + $0x40] sm:$0xff]
        %v980 = vld [vmem:[%s970 + $0x48] sm:$0xff]
        %v981 = vld [vmem:[%s970 + $0x50] sm:$0xff]
        %v982 = vld [vmem:[%s970 + $0x58] sm:$0xff]
        %v983 = vld [vmem:[%s970 + $0x60] sm:$0xff]
        %v984 = vld [vmem:[%s970 + $0x68] sm:$0xff]
        %v985 = vld [vmem:[%s970 + $0x70] sm:$0xff]
        %v986 = vld [vmem:[%s970 + $0x78] sm:$0xff]
        %v987 = vld [vmem:[%s970 + $0x80] sm:$0xff]
        %v988 = vld [vmem:[%s970 + $0x88] sm:$0xff]
        %v989 = vld [vmem:[%s970 + $0x90] sm:$0xff]
        %v990 = vld [vmem:[%s970 + $0x98] sm:$0xff]
        %v991 = vld [vmem:[%s970 + $0xa0] sm:$0xff]
        %v992 = vld [vmem:[%s970 + $0xa8] sm:$0xff]
        %v993 = vld [vmem:[%s970 + $0xb0] sm:$0xff]
        %v994 = vld [vmem:[%s970 + $0xb8] sm:$0xff]
        %v995 = vld [vmem:[%s970 + $0xc0] sm:$0xff]
        %v996 = vld [vmem:[%s970 + $0xc8] sm:$0xff]
        %v997 = vld [vmem:[%s970 + $0xd0] sm:$0xff]
        %v998 = vld [vmem:[%s970 + $0xd8] sm:$0xff]
        %v999 = vld [vmem:[%s970 + $0xe0] sm:$0xff]
        %v1000 = vld [vmem:[%s970 + $0xe8] sm:$0xff]
        %v1001 = vld [vmem:[%s970 + $0xf0] sm:$0xff]
        %v1002 = vld [vmem:[%s970 + $0xf8] sm:$0xff]
        %v1004 = vsel %vm327, %v971, 0
        %v1007 = vsel %vm327, %v972, 0
        %v1010 = vsel %vm327, %v973, 0
        %v1013 = vsel %vm327, %v974, 0
        %v1016 = vsel %vm327, %v975, 0
        %v1019 = vsel %vm327, %v976, 0
        %v1022 = vsel %vm327, %v977, 0
        %v1025 = vsel %vm327, %v978, 0
        %v1028 = vsel %vm327, %v979, 0
        %v1031 = vsel %vm327, %v980, 0
        %v1034 = vsel %vm327, %v981, 0
        %v1037 = vsel %vm327, %v982, 0
        %v1040 = vsel %vm327, %v983, 0
        %v1043 = vsel %vm327, %v984, 0
        %v1046 = vsel %vm327, %v985, 0
        %v1049 = vsel %vm327, %v986, 0
        %v1052 = vsel %vm327, %v987, 0
        %v1055 = vsel %vm327, %v988, 0
        %v1058 = vsel %vm327, %v989, 0
        %v1061 = vsel %vm327, %v990, 0
        %v1064 = vsel %vm327, %v991, 0
        %v1067 = vsel %vm327, %v992, 0
        %v1070 = vsel %vm327, %v993, 0
        %v1073 = vsel %vm327, %v994, 0
        %v1076 = vsel %vm327, %v995, 0
        %v1079 = vsel %vm327, %v996, 0
        %v1082 = vsel %vm327, %v997, 0
        %v1085 = vsel %vm327, %v998, 0
        %v1088 = vsel %vm327, %v999, 0
        %v1091 = vsel %vm327, %v1000, 0
        %v1094 = vsel %vm327, %v1001, 0
        %v1097 = vsel %vm327, %v1002, 0
        %1099 = vmatprep.subr.mxu0 0.0
        %1100 = vmatpush1.msra.mxu0 0.0
        %1101 = vmatprep.subr.mxu0 0.0
        %1102 = vmatpush1.msra.mxu0 0.0
        %1103 = vmatprep.subr.mxu0 0.0
        %1104 = vmatpush1.msra.mxu0 0.0
        %1105 = vmatprep.subr.mxu0 0.0
        %1106 = vmatpush1.msra.mxu0 0.0
        %1107 = vmatprep.subr.mxu0 0.0
        %1108 = vmatpush1.msra.mxu0 0.0
        %1109 = vmatprep.subr.mxu0 0.0
        %1110 = vmatpush1.msra.mxu0 0.0
        %1111 = vmatprep.subr.mxu0 0.0
        %1112 = vmatpush1.msra.mxu0 0.0
        %1113 = vmatprep.subr.mxu0 0.0
        %1114 = vmatpush1.msra.mxu0 0.0
        %1115 = vmatprep.subr.mxu0 0.0
        %1116 = vmatpush1.msra.mxu0 %v261
        %1117 = vmatprep.subr.mxu0 0.0
        %1118 = vmatpush1.msra.mxu0 %v260
        %1119 = vmatprep.subr.mxu0 0.0
        %1120 = vmatpush1.msra.mxu0 %v259
        %1121 = vmatprep.subr.mxu0 0.0
        %1122 = vmatpush1.msra.mxu0 %v258
        %1123 = vmatprep.subr.mxu0 0.0
        %1124 = vmatpush1.msra.mxu0 %v257
        %1125 = vmatprep.subr.mxu0 0.0
        %1126 = vmatpush1.msra.mxu0 %v256
        %1127 = vmatprep.subr.mxu0 0.0
        %1128 = vmatpush1.msra.mxu0 %v255
        %1129 = vmatprep.subr.mxu0 0.0
        %1130 = vmatpush1.msra.mxu0 %v254
        %1131 = vmatprep.subr.mxu0 0.0
        %1132 = vmatpush2.msra.mxu0 0.0
        %1133 = vmatprep.subr.mxu0 0.0
        %1134 = vmatpush2.msra.mxu0 0.0
        %1135 = vmatprep.subr.mxu0 0.0
        %1136 = vmatpush2.msra.mxu0 0.0
        %1137 = vmatprep.subr.mxu0 0.0
        %1138 = vmatpush2.msra.mxu0 0.0
        %1139 = vmatprep.subr.mxu0 0.0
        %1140 = vmatpush2.msra.mxu0 0.0
        %1141 = vmatprep.subr.mxu0 0.0
        %1142 = vmatpush2.msra.mxu0 0.0
        %1143 = vmatprep.subr.mxu0 0.0
        %1144 = vmatpush2.msra.mxu0 0.0
        %1145 = vmatprep.subr.mxu0 0.0
        %1146 = vmatpush2.msra.mxu0 0.0
        %1147 = vmatprep.subr.mxu0 0.0
        %1148 = vmatpush2.msra.mxu0 0.0
        %1149 = vmatprep.subr.mxu0 0.0
        %1150 = vmatpush2.msra.mxu0 0.0
        %1151 = vmatprep.subr.mxu0 0.0
        %1152 = vmatpush2.msra.mxu0 0.0
        %1153 = vmatprep.subr.mxu0 0.0
        %1154 = vmatpush2.msra.mxu0 0.0
        %1155 = vmatprep.subr.mxu0 0.0
        %1156 = vmatpush2.msra.mxu0 0.0
        %1157 = vmatprep.subr.mxu0 0.0
        %1158 = vmatpush2.msra.mxu0 0.0
        %1159 = vmatprep.subr.mxu0 0.0
        %1160 = vmatpush2.msra.mxu0 0.0
        %1161 = vmatprep.subr.mxu0 0.0
        %1162 = vmatpush2.msra.mxu0 0.0
        %1163 = vmatprep.mubr.f32.mxu0 0.0
        %1164 = vmatmul.mubr.f32.gmra.mxu0 %v1004
        %v1165 = vpop.f32.mrf.mxu0
        %v1166 = vadd.f32 0.0, %v1165
        %v1167 = vpop.f32.mrf.mxu0
        %1168 = vmatprep.mubr.f32.mxu0 0.0
        %1169 = vmatmul.mubr.f32.gmra.mxu0 %v1007
        %v1170 = vpop.f32.mrf.mxu0
        %v1171 = vadd.f32 0.0, %v1170
        %v1172 = vpop.f32.mrf.mxu0
        %1173 = vmatprep.mubr.f32.mxu0 0.0
        %1174 = vmatmul.mubr.f32.gmra.mxu0 %v1010
        %v1175 = vpop.f32.mrf.mxu0
        %v1176 = vadd.f32 0.0, %v1175
        %v1177 = vpop.f32.mrf.mxu0
        %1178 = vmatprep.mubr.f32.mxu0 0.0
        %1179 = vmatmul.mubr.f32.gmra.mxu0 %v1013
        %v1180 = vpop.f32.mrf.mxu0
        %v1181 = vadd.f32 0.0, %v1180
        %v1182 = vpop.f32.mrf.mxu0
        %1183 = vmatprep.mubr.f32.mxu0 0.0
        %1184 = vmatmul.mubr.f32.gmra.mxu0 %v1016
        %v1185 = vpop.f32.mrf.mxu0
        %v1186 = vadd.f32 0.0, %v1185
        %v1187 = vpop.f32.mrf.mxu0
        %1188 = vmatprep.mubr.f32.mxu0 0.0
        %1189 = vmatmul.mubr.f32.gmra.mxu0 %v1019
        %v1190 = vpop.f32.mrf.mxu0
        %v1191 = vadd.f32 0.0, %v1190
        %v1192 = vpop.f32.mrf.mxu0
        %1193 = vmatprep.mubr.f32.mxu0 0.0
        %1194 = vmatmul.mubr.f32.gmra.mxu0 %v1022
        %v1195 = vpop.f32.mrf.mxu0
        %v1196 = vadd.f32 0.0, %v1195
        %v1197 = vpop.f32.mrf.mxu0
        %1198 = vmatprep.mubr.f32.mxu0 0.0
        %1199 = vmatmul.mubr.f32.gmra.mxu0 %v1025
        %v1200 = vpop.f32.mrf.mxu0
        %v1201 = vadd.f32 0.0, %v1200
        %v1202 = vpop.f32.mrf.mxu0
        %1203 = vmatprep.mubr.f32.mxu0 0.0
        %1204 = vmatmul.mubr.f32.gmra.mxu0 %v1028
        %v1205 = vpop.f32.mrf.mxu0
        %v1206 = vadd.f32 0.0, %v1205
        %v1207 = vpop.f32.mrf.mxu0
        %1208 = vmatprep.mubr.f32.mxu0 0.0
        %1209 = vmatmul.mubr.f32.gmra.mxu0 %v1031
        %v1210 = vpop.f32.mrf.mxu0
        %v1211 = vadd.f32 0.0, %v1210
        %v1212 = vpop.f32.mrf.mxu0
        %1213 = vmatprep.mubr.f32.mxu0 0.0
        %1214 = vmatmul.mubr.f32.gmra.mxu0 %v1034
        %v1215 = vpop.f32.mrf.mxu0
        %v1216 = vadd.f32 0.0, %v1215
        %v1217 = vpop.f32.mrf.mxu0
        %1218 = vmatprep.mubr.f32.mxu0 0.0
        %1219 = vmatmul.mubr.f32.gmra.mxu0 %v1037
        %v1220 = vpop.f32.mrf.mxu0
        %v1221 = vadd.f32 0.0, %v1220
        %v1222 = vpop.f32.mrf.mxu0
        %1223 = vmatprep.mubr.f32.mxu0 0.0
        %1224 = vmatmul.mubr.f32.gmra.mxu0 %v1040
        %v1225 = vpop.f32.mrf.mxu0
        %v1226 = vadd.f32 0.0, %v1225
        %v1227 = vpop.f32.mrf.mxu0
        %1228 = vmatprep.mubr.f32.mxu0 0.0
        %1229 = vmatmul.mubr.f32.gmra.mxu0 %v1043
        %v1230 = vpop.f32.mrf.mxu0
        %v1231 = vadd.f32 0.0, %v1230
        %v1232 = vpop.f32.mrf.mxu0
        %1233 = vmatprep.mubr.f32.mxu0 0.0
        %1234 = vmatmul.mubr.f32.gmra.mxu0 %v1046
        %v1235 = vpop.f32.mrf.mxu0
        %v1236 = vadd.f32 0.0, %v1235
        %v1237 = vpop.f32.mrf.mxu0
        %1238 = vmatprep.mubr.f32.mxu0 0.0
        %1239 = vmatmul.mubr.f32.gmra.mxu0 %v1049
        %v1240 = vpop.f32.mrf.mxu0
        %v1241 = vadd.f32 0.0, %v1240
        %v1242 = vpop.f32.mrf.mxu0
        %1243 = vmatprep.mubr.f32.mxu0 0.0
        %1244 = vmatmul.mubr.f32.gmra.mxu0 %v1052
        %v1245 = vpop.f32.mrf.mxu0
        %v1246 = vadd.f32 0.0, %v1245
        %v1247 = vpop.f32.mrf.mxu0
        %1248 = vmatprep.mubr.f32.mxu0 0.0
        %1249 = vmatmul.mubr.f32.gmra.mxu0 %v1055
        %v1250 = vpop.f32.mrf.mxu0
        %v1251 = vadd.f32 0.0, %v1250
        %v1252 = vpop.f32.mrf.mxu0
        %1253 = vmatprep.mubr.f32.mxu0 0.0
        %1254 = vmatmul.mubr.f32.gmra.mxu0 %v1058
        %v1255 = vpop.f32.mrf.mxu0
        %v1256 = vadd.f32 0.0, %v1255
        %v1257 = vpop.f32.mrf.mxu0
        %1258 = vmatprep.mubr.f32.mxu0 0.0
        %1259 = vmatmul.mubr.f32.gmra.mxu0 %v1061
        %v1260 = vpop.f32.mrf.mxu0
        %v1261 = vadd.f32 0.0, %v1260
        %v1262 = vpop.f32.mrf.mxu0
        %1263 = vmatprep.mubr.f32.mxu0 0.0
        %1264 = vmatmul.mubr.f32.gmra.mxu0 %v1064
        %v1265 = vpop.f32.mrf.mxu0
        %v1266 = vadd.f32 0.0, %v1265
        %v1267 = vpop.f32.mrf.mxu0
        %1268 = vmatprep.mubr.f32.mxu0 0.0
        %1269 = vmatmul.mubr.f32.gmra.mxu0 %v1067
        %v1270 = vpop.f32.mrf.mxu0
        %v1271 = vadd.f32 0.0, %v1270
        %v1272 = vpop.f32.mrf.mxu0
        %1273 = vmatprep.mubr.f32.mxu0 0.0
        %1274 = vmatmul.mubr.f32.gmra.mxu0 %v1070
        %v1275 = vpop.f32.mrf.mxu0
        %v1276 = vadd.f32 0.0, %v1275
        %v1277 = vpop.f32.mrf.mxu0
        %1278 = vmatprep.mubr.f32.mxu0 0.0
        %1279 = vmatmul.mubr.f32.gmra.mxu0 %v1073
        %v1280 = vpop.f32.mrf.mxu0
        %v1281 = vadd.f32 0.0, %v1280
        %v1282 = vpop.f32.mrf.mxu0
        %1283 = vmatprep.mubr.f32.mxu0 0.0
        %1284 = vmatmul.mubr.f32.gmra.mxu0 %v1076
        %v1285 = vpop.f32.mrf.mxu0
        %v1286 = vadd.f32 0.0, %v1285
        %v1287 = vpop.f32.mrf.mxu0
        %1288 = vmatprep.mubr.f32.mxu0 0.0
        %1289 = vmatmul.mubr.f32.gmra.mxu0 %v1079
        %v1290 = vpop.f32.mrf.mxu0
        %v1291 = vadd.f32 0.0, %v1290
        %v1292 = vpop.f32.mrf.mxu0
        %1293 = vmatprep.mubr.f32.mxu0 0.0
        %1294 = vmatmul.mubr.f32.gmra.mxu0 %v1082
        %v1295 = vpop.f32.mrf.mxu0
        %v1296 = vadd.f32 0.0, %v1295
        %v1297 = vpop.f32.mrf.mxu0
        %1298 = vmatprep.mubr.f32.mxu0 0.0
        %1299 = vmatmul.mubr.f32.gmra.mxu0 %v1085
        %v1300 = vpop.f32.mrf.mxu0
        %v1301 = vadd.f32 0.0, %v1300
        %v1302 = vpop.f32.mrf.mxu0
        %1303 = vmatprep.mubr.f32.mxu0 0.0
        %1304 = vmatmul.mubr.f32.gmra.mxu0 %v1088
        %v1305 = vpop.f32.mrf.mxu0
        %v1306 = vadd.f32 0.0, %v1305
        %v1307 = vpop.f32.mrf.mxu0
        %1308 = vmatprep.mubr.f32.mxu0 0.0
        %1309 = vmatmul.mubr.f32.gmra.mxu0 %v1091
        %v1310 = vpop.f32.mrf.mxu0
        %v1311 = vadd.f32 0.0, %v1310
        %v1312 = vpop.f32.mrf.mxu0
        %1313 = vmatprep.mubr.f32.mxu0 0.0
        %1314 = vmatmul.mubr.f32.gmra.mxu0 %v1094
        %v1315 = vpop.f32.mrf.mxu0
        %v1316 = vadd.f32 0.0, %v1315
        %v1317 = vpop.f32.mrf.mxu0
        %1318 = vmatprep.mubr.f32.mxu0 0.0
        %1319 = vmatmul.mubr.f32.gmra.mxu0 %v1097
        %v1320 = vpop.f32.mrf.mxu0
        %v1321 = vadd.f32 0.0, %v1320
        %v1322 = vpop.f32.mrf.mxu0
        %1323 = vdwg.mxu0
        %v1324 = vadd.f32 %v812, %v1166
        %v1325 = vadd.f32 %v817, %v1171
        %v1326 = vadd.f32 %v822, %v1176
        %v1327 = vadd.f32 %v827, %v1181
        %v1328 = vadd.f32 %v832, %v1186
        %v1329 = vadd.f32 %v837, %v1191
        %v1330 = vadd.f32 %v842, %v1196
        %v1331 = vadd.f32 %v847, %v1201
        %v1332 = vadd.f32 %v852, %v1206
        %v1333 = vadd.f32 %v857, %v1211
        %v1334 = vadd.f32 %v862, %v1216
        %v1335 = vadd.f32 %v867, %v1221
        %v1336 = vadd.f32 %v872, %v1226
        %v1337 = vadd.f32 %v877, %v1231
        %v1338 = vadd.f32 %v882, %v1236
        %v1339 = vadd.f32 %v887, %v1241
        %v1340 = vadd.f32 %v892, %v1246
        %v1341 = vadd.f32 %v897, %v1251
        %v1342 = vadd.f32 %v902, %v1256
        %v1343 = vadd.f32 %v907, %v1261
        %v1344 = vadd.f32 %v912, %v1266
        %v1345 = vadd.f32 %v917, %v1271
        %v1346 = vadd.f32 %v922, %v1276
        %v1347 = vadd.f32 %v927, %v1281
        %v1348 = vadd.f32 %v932, %v1286
        %v1349 = vadd.f32 %v937, %v1291
        %v1350 = vadd.f32 %v942, %v1296
        %v1351 = vadd.f32 %v947, %v1301
        %v1352 = vadd.f32 %v952, %v1306
        %v1353 = vadd.f32 %v957, %v1311
        %v1354 = vadd.f32 %v962, %v1316
        %v1355 = vadd.f32 %v967, %v1321
        %v1356 = vld [vmem:[%s2] sm:$0x1]
        %v1358 = vlaneseq
        %v1359 = vshrl.u32 %v1358, 7
        %v1360 = vsub.s32 0, %v1359
        %v1361 = vrot.slane %v1356, %v1360
        %v1363 = vadd.f32 %v1324, %v1361
        %v1364 = vadd.f32 %v1325, %v1361
        %v1365 = vadd.f32 %v1326, %v1361
        %v1366 = vadd.f32 %v1327, %v1361
        %v1367 = vadd.f32 %v1328, %v1361
        %v1368 = vadd.f32 %v1329, %v1361
        %v1369 = vadd.f32 %v1330, %v1361
        %v1370 = vadd.f32 %v1331, %v1361
        %v1371 = vadd.f32 %v1332, %v1361
        %v1372 = vadd.f32 %v1333, %v1361
        %v1373 = vadd.f32 %v1334, %v1361
        %v1374 = vadd.f32 %v1335, %v1361
        %v1375 = vadd.f32 %v1336, %v1361
        %v1376 = vadd.f32 %v1337, %v1361
        %v1377 = vadd.f32 %v1338, %v1361
        %v1378 = vadd.f32 %v1339, %v1361
        %v1379 = vadd.f32 %v1340, %v1361
        %v1380 = vadd.f32 %v1341, %v1361
        %v1381 = vadd.f32 %v1342, %v1361
        %v1382 = vadd.f32 %v1343, %v1361
        %v1383 = vadd.f32 %v1344, %v1361
        %v1384 = vadd.f32 %v1345, %v1361
        %v1385 = vadd.f32 %v1346, %v1361
        %v1386 = vadd.f32 %v1347, %v1361
        %v1387 = vadd.f32 %v1348, %v1361
        %v1388 = vadd.f32 %v1349, %v1361
        %v1389 = vadd.f32 %v1350, %v1361
        %v1390 = vadd.f32 %v1351, %v1361
        %v1391 = vadd.f32 %v1352, %v1361
        %v1392 = vadd.f32 %v1353, %v1361
        %v1393 = vadd.f32 %v1354, %v1361
        %v1394 = vadd.f32 %v1355, %v1361
        %vm1395 = vcmp.gt.f32.partialorder %v1363, 20.0
        %vm1396 = vcmp.gt.f32.partialorder %v1364, 20.0
        %vm1397 = vcmp.gt.f32.partialorder %v1365, 20.0
        %vm1398 = vcmp.gt.f32.partialorder %v1366, 20.0
        %vm1399 = vcmp.gt.f32.partialorder %v1367, 20.0
        %vm1400 = vcmp.gt.f32.partialorder %v1368, 20.0
        %vm1401 = vcmp.gt.f32.partialorder %v1369, 20.0
        %vm1402 = vcmp.gt.f32.partialorder %v1370, 20.0
        %vm1403 = vcmp.gt.f32.partialorder %v1371, 20.0
        %vm1404 = vcmp.gt.f32.partialorder %v1372, 20.0
        %vm1405 = vcmp.gt.f32.partialorder %v1373, 20.0
        %vm1406 = vcmp.gt.f32.partialorder %v1374, 20.0
        %vm1407 = vcmp.gt.f32.partialorder %v1375, 20.0
        %vm1408 = vcmp.gt.f32.partialorder %v1376, 20.0
        %vm1409 = vcmp.gt.f32.partialorder %v1377, 20.0
        %vm1410 = vcmp.gt.f32.partialorder %v1378, 20.0
        %vm1411 = vcmp.gt.f32.partialorder %v1379, 20.0
        %vm1412 = vcmp.gt.f32.partialorder %v1380, 20.0
        %vm1413 = vcmp.gt.f32.partialorder %v1381, 20.0
        %vm1414 = vcmp.gt.f32.partialorder %v1382, 20.0
        %vm1415 = vcmp.gt.f32.partialorder %v1383, 20.0
        %vm1416 = vcmp.gt.f32.partialorder %v1384, 20.0
        %vm1417 = vcmp.gt.f32.partialorder %v1385, 20.0
        %vm1418 = vcmp.gt.f32.partialorder %v1386, 20.0
        %vm1419 = vcmp.gt.f32.partialorder %v1387, 20.0
        %vm1420 = vcmp.gt.f32.partialorder %v1388, 20.0
        %vm1421 = vcmp.gt.f32.partialorder %v1389, 20.0
        %vm1422 = vcmp.gt.f32.partialorder %v1390, 20.0
        %vm1423 = vcmp.gt.f32.partialorder %v1391, 20.0
        %vm1424 = vcmp.gt.f32.partialorder %v1392, 20.0
        %vm1425 = vcmp.gt.f32.partialorder %v1393, 20.0
        %vm1426 = vcmp.gt.f32.partialorder %v1394, 20.0
        %v1427 = vmin.f32 %v1363, 20.0
        %v1428 = vmin.f32 %v1364, 20.0
        %v1429 = vmin.f32 %v1365, 20.0
        %v1430 = vmin.f32 %v1366, 20.0
        %v1431 = vmin.f32 %v1367, 20.0
        %v1432 = vmin.f32 %v1368, 20.0
        %v1433 = vmin.f32 %v1369, 20.0
        %v1434 = vmin.f32 %v1370, 20.0
        %v1435 = vmin.f32 %v1371, 20.0
        %v1436 = vmin.f32 %v1372, 20.0
        %v1437 = vmin.f32 %v1373, 20.0
        %v1438 = vmin.f32 %v1374, 20.0
        %v1439 = vmin.f32 %v1375, 20.0
        %v1440 = vmin.f32 %v1376, 20.0
        %v1441 = vmin.f32 %v1377, 20.0
        %v1442 = vmin.f32 %v1378, 20.0
        %v1443 = vmin.f32 %v1379, 20.0
        %v1444 = vmin.f32 %v1380, 20.0
        %v1445 = vmin.f32 %v1381, 20.0
        %v1446 = vmin.f32 %v1382, 20.0
        %v1447 = vmin.f32 %v1383, 20.0
        %v1448 = vmin.f32 %v1384, 20.0
        %v1449 = vmin.f32 %v1385, 20.0
        %v1450 = vmin.f32 %v1386, 20.0
        %v1451 = vmin.f32 %v1387, 20.0
        %v1452 = vmin.f32 %v1388, 20.0
        %v1453 = vmin.f32 %v1389, 20.0
        %v1454 = vmin.f32 %v1390, 20.0
        %v1455 = vmin.f32 %v1391, 20.0
        %v1456 = vmin.f32 %v1392, 20.0
        %v1457 = vmin.f32 %v1393, 20.0
        %v1458 = vmin.f32 %v1394, 20.0
        %v1459 = vmul.f32 %v1427, 1.442695
        %v1460 = vpow.pop %v1459
        %v1461 = vmul.f32 %v1428, 1.442695
        %v1462 = vpow.pop %v1461
        %v1463 = vmul.f32 %v1429, 1.442695
        %v1464 = vpow.pop %v1463
        %v1465 = vmul.f32 %v1430, 1.442695
        %v1466 = vpow.pop %v1465
        %v1467 = vmul.f32 %v1431, 1.442695
        %v1468 = vpow.pop %v1467
        %v1469 = vmul.f32 %v1432, 1.442695
        %v1470 = vpow.pop %v1469
        %v1471 = vmul.f32 %v1433, 1.442695
        %v1472 = vpow.pop %v1471
        %v1473 = vmul.f32 %v1434, 1.442695
        %v1474 = vpow.pop %v1473
        %v1475 = vmul.f32 %v1435, 1.442695
        %v1476 = vpow.pop %v1475
        %v1477 = vmul.f32 %v1436, 1.442695
        %v1478 = vpow.pop %v1477
        %v1479 = vmul.f32 %v1437, 1.442695
        %v1480 = vpow.pop %v1479
        %v1481 = vmul.f32 %v1438, 1.442695
        %v1482 = vpow.pop %v1481
        %v1483 = vmul.f32 %v1439, 1.442695
        %v1484 = vpow.pop %v1483
        %v1485 = vmul.f32 %v1440, 1.442695
        %v1486 = vpow.pop %v1485
        %v1487 = vmul.f32 %v1441, 1.442695
        %v1488 = vpow.pop %v1487
        %v1489 = vmul.f32 %v1442, 1.442695
        %v1490 = vpow.pop %v1489
        %v1491 = vmul.f32 %v1443, 1.442695
        %v1492 = vpow.pop %v1491
        %v1493 = vmul.f32 %v1444, 1.442695
        %v1494 = vpow.pop %v1493
        %v1495 = vmul.f32 %v1445, 1.442695
        %v1496 = vpow.pop %v1495
        %v1497 = vmul.f32 %v1446, 1.442695
        %v1498 = vpow.pop %v1497
        %v1499 = vmul.f32 %v1447, 1.442695
        %v1500 = vpow.pop %v1499
        %v1501 = vmul.f32 %v1448, 1.442695
        %v1502 = vpow.pop %v1501
        %v1503 = vmul.f32 %v1449, 1.442695
        %v1504 = vpow.pop %v1503
        %v1505 = vmul.f32 %v1450, 1.442695
        %v1506 = vpow.pop %v1505
        %v1507 = vmul.f32 %v1451, 1.442695
        %v1508 = vpow.pop %v1507
        %v1509 = vmul.f32 %v1452, 1.442695
        %v1510 = vpow.pop %v1509
        %v1511 = vmul.f32 %v1453, 1.442695
        %v1512 = vpow.pop %v1511
        %v1513 = vmul.f32 %v1454, 1.442695
        %v1514 = vpow.pop %v1513
        %v1515 = vmul.f32 %v1455, 1.442695
        %v1516 = vpow.pop %v1515
        %v1517 = vmul.f32 %v1456, 1.442695
        %v1518 = vpow.pop %v1517
        %v1519 = vmul.f32 %v1457, 1.442695
        %v1520 = vpow.pop %v1519
        %v1521 = vmul.f32 %v1458, 1.442695
        %v1522 = vpow.pop %v1521
        %v1523 = vadd.f32 %v1460, 1.0
        %v1524 = vlog2.pop %v1523
        %v1525 = vmul.f32 %v1524, 0.6931472
        %v1526 = vmul.f32 -0.5, %v1460
        %v1527 = vadd.f32 %v1526, 1.0
        %v1528 = vmul.f32 %v1527, %v1460
        %v1529 = vand.u32 2147483647, %v1460
        %vm1530 = vcmp.lt.f32.partialorder %v1529, 0.0004427343
        %v1531 = vsel %vm1530, %v1528, %v1525
        %v1532 = vadd.f32 %v1462, 1.0
        %v1533 = vlog2.pop %v1532
        %v1534 = vmul.f32 %v1533, 0.6931472
        %v1535 = vmul.f32 -0.5, %v1462
        %v1536 = vadd.f32 %v1535, 1.0
        %v1537 = vmul.f32 %v1536, %v1462
        %v1538 = vand.u32 2147483647, %v1462
        %vm1539 = vcmp.lt.f32.partialorder %v1538, 0.0004427343
        %v1540 = vsel %vm1539, %v1537, %v1534
        %v1541 = vadd.f32 %v1464, 1.0
        %v1542 = vlog2.pop %v1541
        %v1543 = vmul.f32 %v1542, 0.6931472
        %v1544 = vmul.f32 -0.5, %v1464
        %v1545 = vadd.f32 %v1544, 1.0
        %v1546 = vmul.f32 %v1545, %v1464
        %v1547 = vand.u32 2147483647, %v1464
        %vm1548 = vcmp.lt.f32.partialorder %v1547, 0.0004427343
        %v1549 = vsel %vm1548, %v1546, %v1543
        %v1550 = vadd.f32 %v1466, 1.0
        %v1551 = vlog2.pop %v1550
        %v1552 = vmul.f32 %v1551, 0.6931472
        %v1553 = vmul.f32 -0.5, %v1466
        %v1554 = vadd.f32 %v1553, 1.0
        %v1555 = vmul.f32 %v1554, %v1466
        %v1556 = vand.u32 2147483647, %v1466
        %vm1557 = vcmp.lt.f32.partialorder %v1556, 0.0004427343
        %v1558 = vsel %vm1557, %v1555, %v1552
        %v1559 = vadd.f32 %v1468, 1.0
        %v1560 = vlog2.pop %v1559
        %v1561 = vmul.f32 %v1560, 0.6931472
        %v1562 = vmul.f32 -0.5, %v1468
        %v1563 = vadd.f32 %v1562, 1.0
        %v1564 = vmul.f32 %v1563, %v1468
        %v1565 = vand.u32 2147483647, %v1468
        %vm1566 = vcmp.lt.f32.partialorder %v1565, 0.0004427343
        %v1567 = vsel %vm1566, %v1564, %v1561
        %v1568 = vadd.f32 %v1470, 1.0
        %v1569 = vlog2.pop %v1568
        %v1570 = vmul.f32 %v1569, 0.6931472
        %v1571 = vmul.f32 -0.5, %v1470
        %v1572 = vadd.f32 %v1571, 1.0
        %v1573 = vmul.f32 %v1572, %v1470
        %v1574 = vand.u32 2147483647, %v1470
        %vm1575 = vcmp.lt.f32.partialorder %v1574, 0.0004427343
        %v1576 = vsel %vm1575, %v1573, %v1570
        %v1577 = vadd.f32 %v1472, 1.0
        %v1578 = vlog2.pop %v1577
        %v1579 = vmul.f32 %v1578, 0.6931472
        %v1580 = vmul.f32 -0.5, %v1472
        %v1581 = vadd.f32 %v1580, 1.0
        %v1582 = vmul.f32 %v1581, %v1472
        %v1583 = vand.u32 2147483647, %v1472
        %vm1584 = vcmp.lt.f32.partialorder %v1583, 0.0004427343
        %v1585 = vsel %vm1584, %v1582, %v1579
        %v1586 = vadd.f32 %v1474, 1.0
        %v1587 = vlog2.pop %v1586
        %v1588 = vmul.f32 %v1587, 0.6931472
        %v1589 = vmul.f32 -0.5, %v1474
        %v1590 = vadd.f32 %v1589, 1.0
        %v1591 = vmul.f32 %v1590, %v1474
        %v1592 = vand.u32 2147483647, %v1474
        %vm1593 = vcmp.lt.f32.partialorder %v1592, 0.0004427343
        %v1594 = vsel %vm1593, %v1591, %v1588
        %v1595 = vadd.f32 %v1476, 1.0
        %v1596 = vlog2.pop %v1595
        %v1597 = vmul.f32 %v1596, 0.6931472
        %v1598 = vmul.f32 -0.5, %v1476
        %v1599 = vadd.f32 %v1598, 1.0
        %v1600 = vmul.f32 %v1599, %v1476
        %v1601 = vand.u32 2147483647, %v1476
        %vm1602 = vcmp.lt.f32.partialorder %v1601, 0.0004427343
        %v1603 = vsel %vm1602, %v1600, %v1597
        %v1604 = vadd.f32 %v1478, 1.0
        %v1605 = vlog2.pop %v1604
        %v1606 = vmul.f32 %v1605, 0.6931472
        %v1607 = vmul.f32 -0.5, %v1478
        %v1608 = vadd.f32 %v1607, 1.0
        %v1609 = vmul.f32 %v1608, %v1478
        %v1610 = vand.u32 2147483647, %v1478
        %vm1611 = vcmp.lt.f32.partialorder %v1610, 0.0004427343
        %v1612 = vsel %vm1611, %v1609, %v1606
        %v1613 = vadd.f32 %v1480, 1.0
        %v1614 = vlog2.pop %v1613
        %v1615 = vmul.f32 %v1614, 0.6931472
        %v1616 = vmul.f32 -0.5, %v1480
        %v1617 = vadd.f32 %v1616, 1.0
        %v1618 = vmul.f32 %v1617, %v1480
        %v1619 = vand.u32 2147483647, %v1480
        %vm1620 = vcmp.lt.f32.partialorder %v1619, 0.0004427343
        %v1621 = vsel %vm1620, %v1618, %v1615
        %v1622 = vadd.f32 %v1482, 1.0
        %v1623 = vlog2.pop %v1622
        %v1624 = vmul.f32 %v1623, 0.6931472
        %v1625 = vmul.f32 -0.5, %v1482
        %v1626 = vadd.f32 %v1625, 1.0
        %v1627 = vmul.f32 %v1626, %v1482
        %v1628 = vand.u32 2147483647, %v1482
        %vm1629 = vcmp.lt.f32.partialorder %v1628, 0.0004427343
        %v1630 = vsel %vm1629, %v1627, %v1624
        %v1631 = vadd.f32 %v1484, 1.0
        %v1632 = vlog2.pop %v1631
        %v1633 = vmul.f32 %v1632, 0.6931472
        %v1634 = vmul.f32 -0.5, %v1484
        %v1635 = vadd.f32 %v1634, 1.0
        %v1636 = vmul.f32 %v1635, %v1484
        %v1637 = vand.u32 2147483647, %v1484
        %vm1638 = vcmp.lt.f32.partialorder %v1637, 0.0004427343
        %v1639 = vsel %vm1638, %v1636, %v1633
        %v1640 = vadd.f32 %v1486, 1.0
        %v1641 = vlog2.pop %v1640
        %v1642 = vmul.f32 %v1641, 0.6931472
        %v1643 = vmul.f32 -0.5, %v1486
        %v1644 = vadd.f32 %v1643, 1.0
        %v1645 = vmul.f32 %v1644, %v1486
        %v1646 = vand.u32 2147483647, %v1486
        %vm1647 = vcmp.lt.f32.partialorder %v1646, 0.0004427343
        %v1648 = vsel %vm1647, %v1645, %v1642
        %v1649 = vadd.f32 %v1488, 1.0
        %v1650 = vlog2.pop %v1649
        %v1651 = vmul.f32 %v1650, 0.6931472
        %v1652 = vmul.f32 -0.5, %v1488
        %v1653 = vadd.f32 %v1652, 1.0
        %v1654 = vmul.f32 %v1653, %v1488
        %v1655 = vand.u32 2147483647, %v1488
        %vm1656 = vcmp.lt.f32.partialorder %v1655, 0.0004427343
        %v1657 = vsel %vm1656, %v1654, %v1651
        %v1658 = vadd.f32 %v1490, 1.0
        %v1659 = vlog2.pop %v1658
        %v1660 = vmul.f32 %v1659, 0.6931472
        %v1661 = vmul.f32 -0.5, %v1490
        %v1662 = vadd.f32 %v1661, 1.0
        %v1663 = vmul.f32 %v1662, %v1490
        %v1664 = vand.u32 2147483647, %v1490
        %vm1665 = vcmp.lt.f32.partialorder %v1664, 0.0004427343
        %v1666 = vsel %vm1665, %v1663, %v1660
        %v1667 = vadd.f32 %v1492, 1.0
        %v1668 = vlog2.pop %v1667
        %v1669 = vmul.f32 %v1668, 0.6931472
        %v1670 = vmul.f32 -0.5, %v1492
        %v1671 = vadd.f32 %v1670, 1.0
        %v1672 = vmul.f32 %v1671, %v1492
        %v1673 = vand.u32 2147483647, %v1492
        %vm1674 = vcmp.lt.f32.partialorder %v1673, 0.0004427343
        %v1675 = vsel %vm1674, %v1672, %v1669
        %v1676 = vadd.f32 %v1494, 1.0
        %v1677 = vlog2.pop %v1676
        %v1678 = vmul.f32 %v1677, 0.6931472
        %v1679 = vmul.f32 -0.5, %v1494
        %v1680 = vadd.f32 %v1679, 1.0
        %v1681 = vmul.f32 %v1680, %v1494
        %v1682 = vand.u32 2147483647, %v1494
        %vm1683 = vcmp.lt.f32.partialorder %v1682, 0.0004427343
        %v1684 = vsel %vm1683, %v1681, %v1678
        %v1685 = vadd.f32 %v1496, 1.0
        %v1686 = vlog2.pop %v1685
        %v1687 = vmul.f32 %v1686, 0.6931472
        %v1688 = vmul.f32 -0.5, %v1496
        %v1689 = vadd.f32 %v1688, 1.0
        %v1690 = vmul.f32 %v1689, %v1496
        %v1691 = vand.u32 2147483647, %v1496
        %vm1692 = vcmp.lt.f32.partialorder %v1691, 0.0004427343
        %v1693 = vsel %vm1692, %v1690, %v1687
        %v1694 = vadd.f32 %v1498, 1.0
        %v1695 = vlog2.pop %v1694
        %v1696 = vmul.f32 %v1695, 0.6931472
        %v1697 = vmul.f32 -0.5, %v1498
        %v1698 = vadd.f32 %v1697, 1.0
        %v1699 = vmul.f32 %v1698, %v1498
        %v1700 = vand.u32 2147483647, %v1498
        %vm1701 = vcmp.lt.f32.partialorder %v1700, 0.0004427343
        %v1702 = vsel %vm1701, %v1699, %v1696
        %v1703 = vadd.f32 %v1500, 1.0
        %v1704 = vlog2.pop %v1703
        %v1705 = vmul.f32 %v1704, 0.6931472
        %v1706 = vmul.f32 -0.5, %v1500
        %v1707 = vadd.f32 %v1706, 1.0
        %v1708 = vmul.f32 %v1707, %v1500
        %v1709 = vand.u32 2147483647, %v1500
        %vm1710 = vcmp.lt.f32.partialorder %v1709, 0.0004427343
        %v1711 = vsel %vm1710, %v1708, %v1705
        %v1712 = vadd.f32 %v1502, 1.0
        %v1713 = vlog2.pop %v1712
        %v1714 = vmul.f32 %v1713, 0.6931472
        %v1715 = vmul.f32 -0.5, %v1502
        %v1716 = vadd.f32 %v1715, 1.0
        %v1717 = vmul.f32 %v1716, %v1502
        %v1718 = vand.u32 2147483647, %v1502
        %vm1719 = vcmp.lt.f32.partialorder %v1718, 0.0004427343
        %v1720 = vsel %vm1719, %v1717, %v1714
        %v1721 = vadd.f32 %v1504, 1.0
        %v1722 = vlog2.pop %v1721
        %v1723 = vmul.f32 %v1722, 0.6931472
        %v1724 = vmul.f32 -0.5, %v1504
        %v1725 = vadd.f32 %v1724, 1.0
        %v1726 = vmul.f32 %v1725, %v1504
        %v1727 = vand.u32 2147483647, %v1504
        %vm1728 = vcmp.lt.f32.partialorder %v1727, 0.0004427343
        %v1729 = vsel %vm1728, %v1726, %v1723
        %v1730 = vadd.f32 %v1506, 1.0
        %v1731 = vlog2.pop %v1730
        %v1732 = vmul.f32 %v1731, 0.6931472
        %v1733 = vmul.f32 -0.5, %v1506
        %v1734 = vadd.f32 %v1733, 1.0
        %v1735 = vmul.f32 %v1734, %v1506
        %v1736 = vand.u32 2147483647, %v1506
        %vm1737 = vcmp.lt.f32.partialorder %v1736, 0.0004427343
        %v1738 = vsel %vm1737, %v1735, %v1732
        %v1739 = vadd.f32 %v1508, 1.0
        %v1740 = vlog2.pop %v1739
        %v1741 = vmul.f32 %v1740, 0.6931472
        %v1742 = vmul.f32 -0.5, %v1508
        %v1743 = vadd.f32 %v1742, 1.0
        %v1744 = vmul.f32 %v1743, %v1508
        %v1745 = vand.u32 2147483647, %v1508
        %vm1746 = vcmp.lt.f32.partialorder %v1745, 0.0004427343
        %v1747 = vsel %vm1746, %v1744, %v1741
        %v1748 = vadd.f32 %v1510, 1.0
        %v1749 = vlog2.pop %v1748
        %v1750 = vmul.f32 %v1749, 0.6931472
        %v1751 = vmul.f32 -0.5, %v1510
        %v1752 = vadd.f32 %v1751, 1.0
        %v1753 = vmul.f32 %v1752, %v1510
        %v1754 = vand.u32 2147483647, %v1510
        %vm1755 = vcmp.lt.f32.partialorder %v1754, 0.0004427343
        %v1756 = vsel %vm1755, %v1753, %v1750
        %v1757 = vadd.f32 %v1512, 1.0
        %v1758 = vlog2.pop %v1757
        %v1759 = vmul.f32 %v1758, 0.6931472
        %v1760 = vmul.f32 -0.5, %v1512
        %v1761 = vadd.f32 %v1760, 1.0
        %v1762 = vmul.f32 %v1761, %v1512
        %v1763 = vand.u32 2147483647, %v1512
        %vm1764 = vcmp.lt.f32.partialorder %v1763, 0.0004427343
        %v1765 = vsel %vm1764, %v1762, %v1759
        %v1766 = vadd.f32 %v1514, 1.0
        %v1767 = vlog2.pop %v1766
        %v1768 = vmul.f32 %v1767, 0.6931472
        %v1769 = vmul.f32 -0.5, %v1514
        %v1770 = vadd.f32 %v1769, 1.0
        %v1771 = vmul.f32 %v1770, %v1514
        %v1772 = vand.u32 2147483647, %v1514
        %vm1773 = vcmp.lt.f32.partialorder %v1772, 0.0004427343
        %v1774 = vsel %vm1773, %v1771, %v1768
        %v1775 = vadd.f32 %v1516, 1.0
        %v1776 = vlog2.pop %v1775
        %v1777 = vmul.f32 %v1776, 0.6931472
        %v1778 = vmul.f32 -0.5, %v1516
        %v1779 = vadd.f32 %v1778, 1.0
        %v1780 = vmul.f32 %v1779, %v1516
        %v1781 = vand.u32 2147483647, %v1516
        %vm1782 = vcmp.lt.f32.partialorder %v1781, 0.0004427343
        %v1783 = vsel %vm1782, %v1780, %v1777
        %v1784 = vadd.f32 %v1518, 1.0
        %v1785 = vlog2.pop %v1784
        %v1786 = vmul.f32 %v1785, 0.6931472
        %v1787 = vmul.f32 -0.5, %v1518
        %v1788 = vadd.f32 %v1787, 1.0
        %v1789 = vmul.f32 %v1788, %v1518
        %v1790 = vand.u32 2147483647, %v1518
        %vm1791 = vcmp.lt.f32.partialorder %v1790, 0.0004427343
        %v1792 = vsel %vm1791, %v1789, %v1786
        %v1793 = vadd.f32 %v1520, 1.0
        %v1794 = vlog2.pop %v1793
        %v1795 = vmul.f32 %v1794, 0.6931472
        %v1796 = vmul.f32 -0.5, %v1520
        %v1797 = vadd.f32 %v1796, 1.0
        %v1798 = vmul.f32 %v1797, %v1520
        %v1799 = vand.u32 2147483647, %v1520
        %vm1800 = vcmp.lt.f32.partialorder %v1799, 0.0004427343
        %v1801 = vsel %vm1800, %v1798, %v1795
        %v1802 = vadd.f32 %v1522, 1.0
        %v1803 = vlog2.pop %v1802
        %v1804 = vmul.f32 %v1803, 0.6931472
        %v1805 = vmul.f32 -0.5, %v1522
        %v1806 = vadd.f32 %v1805, 1.0
        %v1807 = vmul.f32 %v1806, %v1522
        %v1808 = vand.u32 2147483647, %v1522
        %vm1809 = vcmp.lt.f32.partialorder %v1808, 0.0004427343
        %v1810 = vsel %vm1809, %v1807, %v1804
        %v1811 = vsel %vm1395, %v1363, %v1531
        %v1812 = vsel %vm1396, %v1364, %v1540
        %v1813 = vsel %vm1397, %v1365, %v1549
        %v1814 = vsel %vm1398, %v1366, %v1558
        %v1815 = vsel %vm1399, %v1367, %v1567
        %v1816 = vsel %vm1400, %v1368, %v1576
        %v1817 = vsel %vm1401, %v1369, %v1585
        %v1818 = vsel %vm1402, %v1370, %v1594
        %v1819 = vsel %vm1403, %v1371, %v1603
        %v1820 = vsel %vm1404, %v1372, %v1612
        %v1821 = vsel %vm1405, %v1373, %v1621
        %v1822 = vsel %vm1406, %v1374, %v1630
        %v1823 = vsel %vm1407, %v1375, %v1639
        %v1824 = vsel %vm1408, %v1376, %v1648
        %v1825 = vsel %vm1409, %v1377, %v1657
        %v1826 = vsel %vm1410, %v1378, %v1666
        %v1827 = vsel %vm1411, %v1379, %v1675
        %v1828 = vsel %vm1412, %v1380, %v1684
        %v1829 = vsel %vm1413, %v1381, %v1693
        %v1830 = vsel %vm1414, %v1382, %v1702
        %v1831 = vsel %vm1415, %v1383, %v1711
        %v1832 = vsel %vm1416, %v1384, %v1720
        %v1833 = vsel %vm1417, %v1385, %v1729
        %v1834 = vsel %vm1418, %v1386, %v1738
        %v1835 = vsel %vm1419, %v1387, %v1747
        %v1836 = vsel %vm1420, %v1388, %v1756
        %v1837 = vsel %vm1421, %v1389, %v1765
        %v1838 = vsel %vm1422, %v1390, %v1774
        %v1839 = vsel %vm1423, %v1391, %v1783
        %v1840 = vsel %vm1424, %v1392, %v1792
        %v1841 = vsel %vm1425, %v1393, %v1801
        %v1842 = vsel %vm1426, %v1394, %v1810
        %v1843 = vld [vmem:[%s3] sm:$0xff]
        %v1844 = vld [vmem:[%s3 + $0x8] sm:$0xff]
        %v1845 = vld [vmem:[%s3 + $0x10] sm:$0xff]
        %v1846 = vld [vmem:[%s3 + $0x18] sm:$0xff]
        %v1847 = vld [vmem:[%s3 + $0x20] sm:$0xff]
        %v1848 = vld [vmem:[%s3 + $0x28] sm:$0xff]
        %v1849 = vld [vmem:[%s3 + $0x30] sm:$0xff]
        %v1850 = vld [vmem:[%s3 + $0x38] sm:$0xff]
        %v1851 = vld [vmem:[%s4] sm:$0x1]
        %v1853 = vlaneseq
        %v1854 = vshrl.u32 %v1853, 7
        %v1855 = vsub.s32 0, %v1854
        %v1856 = vrot.slane %v1851, %v1855
        %v1859 = vsel %vm327, %v1811, 0
        %v1862 = vsel %vm327, %v1812, 0
        %v1865 = vsel %vm327, %v1813, 0
        %v1868 = vsel %vm327, %v1814, 0
        %v1871 = vsel %vm327, %v1815, 0
        %v1874 = vsel %vm327, %v1816, 0
        %v1877 = vsel %vm327, %v1817, 0
        %v1880 = vsel %vm327, %v1818, 0
        %v1883 = vsel %vm327, %v1819, 0
        %v1886 = vsel %vm327, %v1820, 0
        %v1889 = vsel %vm327, %v1821, 0
        %v1892 = vsel %vm327, %v1822, 0
        %v1895 = vsel %vm327, %v1823, 0
        %v1898 = vsel %vm327, %v1824, 0
        %v1901 = vsel %vm327, %v1825, 0
        %v1904 = vsel %vm327, %v1826, 0
        %v1907 = vsel %vm327, %v1827, 0
        %v1910 = vsel %vm327, %v1828, 0
        %v1913 = vsel %vm327, %v1829, 0
        %v1916 = vsel %vm327, %v1830, 0
        %v1919 = vsel %vm327, %v1831, 0
        %v1922 = vsel %vm327, %v1832, 0
        %v1925 = vsel %vm327, %v1833, 0
        %v1928 = vsel %vm327, %v1834, 0
        %v1931 = vsel %vm327, %v1835, 0
        %v1934 = vsel %vm327, %v1836, 0
        %v1937 = vsel %vm327, %v1837, 0
        %v1940 = vsel %vm327, %v1838, 0
        %v1943 = vsel %vm327, %v1839, 0
        %v1946 = vsel %vm327, %v1840, 0
        %v1949 = vsel %vm327, %v1841, 0
        %v1952 = vsel %vm327, %v1842, 0
        %1954 = vmatprep.subr.mxu0 0.0
        %1955 = vmatpush1.msra.mxu0 0.0
        %1956 = vmatprep.subr.mxu0 0.0
        %1957 = vmatpush1.msra.mxu0 0.0
        %1958 = vmatprep.subr.mxu0 0.0
        %1959 = vmatpush1.msra.mxu0 0.0
        %1960 = vmatprep.subr.mxu0 0.0
        %1961 = vmatpush1.msra.mxu0 0.0
        %1962 = vmatprep.subr.mxu0 0.0
        %1963 = vmatpush1.msra.mxu0 0.0
        %1964 = vmatprep.subr.mxu0 0.0
        %1965 = vmatpush1.msra.mxu0 0.0
        %1966 = vmatprep.subr.mxu0 0.0
        %1967 = vmatpush1.msra.mxu0 0.0
        %1968 = vmatprep.subr.mxu0 0.0
        %1969 = vmatpush1.msra.mxu0 0.0
        %1970 = vmatprep.subr.mxu0 0.0
        %1971 = vmatpush1.msra.mxu0 %v1850
        %1972 = vmatprep.subr.mxu0 0.0
        %1973 = vmatpush1.msra.mxu0 %v1849
        %1974 = vmatprep.subr.mxu0 0.0
        %1975 = vmatpush1.msra.mxu0 %v1848
        %1976 = vmatprep.subr.mxu0 0.0
        %1977 = vmatpush1.msra.mxu0 %v1847
        %1978 = vmatprep.subr.mxu0 0.0
        %1979 = vmatpush1.msra.mxu0 %v1846
        %1980 = vmatprep.subr.mxu0 0.0
        %1981 = vmatpush1.msra.mxu0 %v1845
        %1982 = vmatprep.subr.mxu0 0.0
        %1983 = vmatpush1.msra.mxu0 %v1844
        %1984 = vmatprep.subr.mxu0 0.0
        %1985 = vmatpush1.msra.mxu0 %v1843
        %1986 = vmatprep.subr.mxu0 0.0
        %1987 = vmatpush2.msra.mxu0 0.0
        %1988 = vmatprep.subr.mxu0 0.0
        %1989 = vmatpush2.msra.mxu0 0.0
        %1990 = vmatprep.subr.mxu0 0.0
        %1991 = vmatpush2.msra.mxu0 0.0
        %1992 = vmatprep.subr.mxu0 0.0
        %1993 = vmatpush2.msra.mxu0 0.0
        %1994 = vmatprep.subr.mxu0 0.0
        %1995 = vmatpush2.msra.mxu0 0.0
        %1996 = vmatprep.subr.mxu0 0.0
        %1997 = vmatpush2.msra.mxu0 0.0
        %1998 = vmatprep.subr.mxu0 0.0
        %1999 = vmatpush2.msra.mxu0 0.0
        %2000 = vmatprep.subr.mxu0 0.0
        %2001 = vmatpush2.msra.mxu0 0.0
        %2002 = vmatprep.subr.mxu0 0.0
        %2003 = vmatpush2.msra.mxu0 0.0
        %2004 = vmatprep.subr.mxu0 0.0
        %2005 = vmatpush2.msra.mxu0 0.0
        %2006 = vmatprep.subr.mxu0 0.0
        %2007 = vmatpush2.msra.mxu0 0.0
        %2008 = vmatprep.subr.mxu0 0.0
        %2009 = vmatpush2.msra.mxu0 0.0
        %2010 = vmatprep.subr.mxu0 0.0
        %2011 = vmatpush2.msra.mxu0 0.0
        %2012 = vmatprep.subr.mxu0 0.0
        %2013 = vmatpush2.msra.mxu0 0.0
        %2014 = vmatprep.subr.mxu0 0.0
        %2015 = vmatpush2.msra.mxu0 0.0
        %2016 = vmatprep.subr.mxu0 0.0
        %2017 = vmatpush2.msra.mxu0 0.0
        %2018 = vmatprep.mubr.f32.mxu0 0.0
        %2019 = vmatmul.mubr.f32.gmra.mxu0 %v1859
        %v2020 = vpop.f32.mrf.mxu0
        %v2021 = vadd.f32 %v1856, %v2020
        %v2022 = vpop.f32.mrf.mxu0
        %2023 = vmatprep.mubr.f32.mxu0 0.0
        %2024 = vmatmul.mubr.f32.gmra.mxu0 %v1862
        %v2025 = vpop.f32.mrf.mxu0
        %v2026 = vadd.f32 %v1856, %v2025
        %v2027 = vpop.f32.mrf.mxu0
        %2028 = vmatprep.mubr.f32.mxu0 0.0
        %2029 = vmatmul.mubr.f32.gmra.mxu0 %v1865
        %v2030 = vpop.f32.mrf.mxu0
        %v2031 = vadd.f32 %v1856, %v2030
        %v2032 = vpop.f32.mrf.mxu0
        %2033 = vmatprep.mubr.f32.mxu0 0.0
        %2034 = vmatmul.mubr.f32.gmra.mxu0 %v1868
        %v2035 = vpop.f32.mrf.mxu0
        %v2036 = vadd.f32 %v1856, %v2035
        %v2037 = vpop.f32.mrf.mxu0
        %2038 = vmatprep.mubr.f32.mxu0 0.0
        %2039 = vmatmul.mubr.f32.gmra.mxu0 %v1871
        %v2040 = vpop.f32.mrf.mxu0
        %v2041 = vadd.f32 %v1856, %v2040
        %v2042 = vpop.f32.mrf.mxu0
        %2043 = vmatprep.mubr.f32.mxu0 0.0
        %2044 = vmatmul.mubr.f32.gmra.mxu0 %v1874
        %v2045 = vpop.f32.mrf.mxu0
        %v2046 = vadd.f32 %v1856, %v2045
        %v2047 = vpop.f32.mrf.mxu0
        %2048 = vmatprep.mubr.f32.mxu0 0.0
        %2049 = vmatmul.mubr.f32.gmra.mxu0 %v1877
        %v2050 = vpop.f32.mrf.mxu0
        %v2051 = vadd.f32 %v1856, %v2050
        %v2052 = vpop.f32.mrf.mxu0
        %2053 = vmatprep.mubr.f32.mxu0 0.0
        %2054 = vmatmul.mubr.f32.gmra.mxu0 %v1880
        %v2055 = vpop.f32.mrf.mxu0
        %v2056 = vadd.f32 %v1856, %v2055
        %v2057 = vpop.f32.mrf.mxu0
        %2058 = vmatprep.mubr.f32.mxu0 0.0
        %2059 = vmatmul.mubr.f32.gmra.mxu0 %v1883
        %v2060 = vpop.f32.mrf.mxu0
        %v2061 = vadd.f32 %v1856, %v2060
        %v2062 = vpop.f32.mrf.mxu0
        %2063 = vmatprep.mubr.f32.mxu0 0.0
        %2064 = vmatmul.mubr.f32.gmra.mxu0 %v1886
        %v2065 = vpop.f32.mrf.mxu0
        %v2066 = vadd.f32 %v1856, %v2065
        %v2067 = vpop.f32.mrf.mxu0
        %2068 = vmatprep.mubr.f32.mxu0 0.0
        %2069 = vmatmul.mubr.f32.gmra.mxu0 %v1889
        %v2070 = vpop.f32.mrf.mxu0
        %v2071 = vadd.f32 %v1856, %v2070
        %v2072 = vpop.f32.mrf.mxu0
        %2073 = vmatprep.mubr.f32.mxu0 0.0
        %2074 = vmatmul.mubr.f32.gmra.mxu0 %v1892
        %v2075 = vpop.f32.mrf.mxu0
        %v2076 = vadd.f32 %v1856, %v2075
        %v2077 = vpop.f32.mrf.mxu0
        %2078 = vmatprep.mubr.f32.mxu0 0.0
        %2079 = vmatmul.mubr.f32.gmra.mxu0 %v1895
        %v2080 = vpop.f32.mrf.mxu0
        %v2081 = vadd.f32 %v1856, %v2080
        %v2082 = vpop.f32.mrf.mxu0
        %2083 = vmatprep.mubr.f32.mxu0 0.0
        %2084 = vmatmul.mubr.f32.gmra.mxu0 %v1898
        %v2085 = vpop.f32.mrf.mxu0
        %v2086 = vadd.f32 %v1856, %v2085
        %v2087 = vpop.f32.mrf.mxu0
        %2088 = vmatprep.mubr.f32.mxu0 0.0
        %2089 = vmatmul.mubr.f32.gmra.mxu0 %v1901
        %v2090 = vpop.f32.mrf.mxu0
        %v2091 = vadd.f32 %v1856, %v2090
        %v2092 = vpop.f32.mrf.mxu0
        %2093 = vmatprep.mubr.f32.mxu0 0.0
        %2094 = vmatmul.mubr.f32.gmra.mxu0 %v1904
        %v2095 = vpop.f32.mrf.mxu0
        %v2096 = vadd.f32 %v1856, %v2095
        %v2097 = vpop.f32.mrf.mxu0
        %2098 = vmatprep.mubr.f32.mxu0 0.0
        %2099 = vmatmul.mubr.f32.gmra.mxu0 %v1907
        %v2100 = vpop.f32.mrf.mxu0
        %v2101 = vadd.f32 %v1856, %v2100
        %v2102 = vpop.f32.mrf.mxu0
        %2103 = vmatprep.mubr.f32.mxu0 0.0
        %2104 = vmatmul.mubr.f32.gmra.mxu0 %v1910
        %v2105 = vpop.f32.mrf.mxu0
        %v2106 = vadd.f32 %v1856, %v2105
        %v2107 = vpop.f32.mrf.mxu0
        %2108 = vmatprep.mubr.f32.mxu0 0.0
        %2109 = vmatmul.mubr.f32.gmra.mxu0 %v1913
        %v2110 = vpop.f32.mrf.mxu0
        %v2111 = vadd.f32 %v1856, %v2110
        %v2112 = vpop.f32.mrf.mxu0
        %2113 = vmatprep.mubr.f32.mxu0 0.0
        %2114 = vmatmul.mubr.f32.gmra.mxu0 %v1916
        %v2115 = vpop.f32.mrf.mxu0
        %v2116 = vadd.f32 %v1856, %v2115
        %v2117 = vpop.f32.mrf.mxu0
        %2118 = vmatprep.mubr.f32.mxu0 0.0
        %2119 = vmatmul.mubr.f32.gmra.mxu0 %v1919
        %v2120 = vpop.f32.mrf.mxu0
        %v2121 = vadd.f32 %v1856, %v2120
        %v2122 = vpop.f32.mrf.mxu0
        %2123 = vmatprep.mubr.f32.mxu0 0.0
        %2124 = vmatmul.mubr.f32.gmra.mxu0 %v1922
        %v2125 = vpop.f32.mrf.mxu0
        %v2126 = vadd.f32 %v1856, %v2125
        %v2127 = vpop.f32.mrf.mxu0
        %2128 = vmatprep.mubr.f32.mxu0 0.0
        %2129 = vmatmul.mubr.f32.gmra.mxu0 %v1925
        %v2130 = vpop.f32.mrf.mxu0
        %v2131 = vadd.f32 %v1856, %v2130
        %v2132 = vpop.f32.mrf.mxu0
        %2133 = vmatprep.mubr.f32.mxu0 0.0
        %2134 = vmatmul.mubr.f32.gmra.mxu0 %v1928
        %v2135 = vpop.f32.mrf.mxu0
        %v2136 = vadd.f32 %v1856, %v2135
        %v2137 = vpop.f32.mrf.mxu0
        %2138 = vmatprep.mubr.f32.mxu0 0.0
        %2139 = vmatmul.mubr.f32.gmra.mxu0 %v1931
        %v2140 = vpop.f32.mrf.mxu0
        %v2141 = vadd.f32 %v1856, %v2140
        %v2142 = vpop.f32.mrf.mxu0
        %2143 = vmatprep.mubr.f32.mxu0 0.0
        %2144 = vmatmul.mubr.f32.gmra.mxu0 %v1934
        %v2145 = vpop.f32.mrf.mxu0
        %v2146 = vadd.f32 %v1856, %v2145
        %v2147 = vpop.f32.mrf.mxu0
        %2148 = vmatprep.mubr.f32.mxu0 0.0
        %2149 = vmatmul.mubr.f32.gmra.mxu0 %v1937
        %v2150 = vpop.f32.mrf.mxu0
        %v2151 = vadd.f32 %v1856, %v2150
        %v2152 = vpop.f32.mrf.mxu0
        %2153 = vmatprep.mubr.f32.mxu0 0.0
        %2154 = vmatmul.mubr.f32.gmra.mxu0 %v1940
        %v2155 = vpop.f32.mrf.mxu0
        %v2156 = vadd.f32 %v1856, %v2155
        %v2157 = vpop.f32.mrf.mxu0
        %2158 = vmatprep.mubr.f32.mxu0 0.0
        %2159 = vmatmul.mubr.f32.gmra.mxu0 %v1943
        %v2160 = vpop.f32.mrf.mxu0
        %v2161 = vadd.f32 %v1856, %v2160
        %v2162 = vpop.f32.mrf.mxu0
        %2163 = vmatprep.mubr.f32.mxu0 0.0
        %2164 = vmatmul.mubr.f32.gmra.mxu0 %v1946
        %v2165 = vpop.f32.mrf.mxu0
        %v2166 = vadd.f32 %v1856, %v2165
        %v2167 = vpop.f32.mrf.mxu0
        %2168 = vmatprep.mubr.f32.mxu0 0.0
        %2169 = vmatmul.mubr.f32.gmra.mxu0 %v1949
        %v2170 = vpop.f32.mrf.mxu0
        %v2171 = vadd.f32 %v1856, %v2170
        %v2172 = vpop.f32.mrf.mxu0
        %2173 = vmatprep.mubr.f32.mxu0 0.0
        %2174 = vmatmul.mubr.f32.gmra.mxu0 %v1952
        %v2175 = vpop.f32.mrf.mxu0
        %v2176 = vadd.f32 %v1856, %v2175
        %v2177 = vpop.f32.mrf.mxu0
        %2178 = vdwg.mxu0
        %2179 = vxpose.xlu0.b32.start [1/16] %v2021, 128
        %2180 = vxpose.xlu0.b32.cont [2/16] %v2026, 128
        %2181 = vxpose.xlu0.b32.cont [3/16] %v2031, 128
        %2182 = vxpose.xlu0.b32.cont [4/16] %v2036, 128
        %2183 = vxpose.xlu0.b32.cont [5/16] %v2041, 128
        %2184 = vxpose.xlu0.b32.cont [6/16] %v2046, 128
        %2185 = vxpose.xlu0.b32.cont [7/16] %v2051, 128
        %2186 = vxpose.xlu0.b32.cont [8/16] %v2056, 128
        %2187 = vxpose.xlu0.b32.cont [9/16] %v2061, 128
        %2188 = vxpose.xlu0.b32.cont [10/16] %v2066, 128
        %2189 = vxpose.xlu0.b32.cont [11/16] %v2071, 128
        %2190 = vxpose.xlu0.b32.cont [12/16] %v2076, 128
        %2191 = vxpose.xlu0.b32.cont [13/16] %v2081, 128
        %2192 = vxpose.xlu0.b32.cont [14/16] %v2086, 128
        %2193 = vxpose.xlu0.b32.cont [15/16] %v2091, 128
        %2194 = vxpose.xlu0.b32.end [16/16] %v2096, 128
        %v2195 = vpop.trf.xlu0
        %v2196 = vpop.trf.xlu0
        %v2197 = vpop.trf.xlu0
        %v2198 = vpop.trf.xlu0
        %v2199 = vpop.trf.xlu0
        %v2200 = vpop.trf.xlu0
        %v2201 = vpop.trf.xlu0
        %v2202 = vpop.trf.xlu0
        %v2203 = vpop.trf.xlu0
        %v2204 = vpop.trf.xlu0
        %v2205 = vpop.trf.xlu0
        %v2206 = vpop.trf.xlu0
        %v2207 = vpop.trf.xlu0
        %v2208 = vpop.trf.xlu0
        %v2209 = vpop.trf.xlu0
        %v2210 = vpop.trf.xlu0
        %2211 = vxpose.xlu0.b32.start [1/16] %v2101, 128
        %2212 = vxpose.xlu0.b32.cont [2/16] %v2106, 128
        %2213 = vxpose.xlu0.b32.cont [3/16] %v2111, 128
        %2214 = vxpose.xlu0.b32.cont [4/16] %v2116, 128
        %2215 = vxpose.xlu0.b32.cont [5/16] %v2121, 128
        %2216 = vxpose.xlu0.b32.cont [6/16] %v2126, 128
        %2217 = vxpose.xlu0.b32.cont [7/16] %v2131, 128
        %2218 = vxpose.xlu0.b32.cont [8/16] %v2136, 128
        %2219 = vxpose.xlu0.b32.cont [9/16] %v2141, 128
        %2220 = vxpose.xlu0.b32.cont [10/16] %v2146, 128
        %2221 = vxpose.xlu0.b32.cont [11/16] %v2151, 128
        %2222 = vxpose.xlu0.b32.cont [12/16] %v2156, 128
        %2223 = vxpose.xlu0.b32.cont [13/16] %v2161, 128
        %2224 = vxpose.xlu0.b32.cont [14/16] %v2166, 128
        %2225 = vxpose.xlu0.b32.cont [15/16] %v2171, 128
        %2226 = vxpose.xlu0.b32.end [16/16] %v2176, 128
        %v2227 = vpop.trf.xlu0
        %v2228 = vpop.trf.xlu0
        %v2229 = vpop.trf.xlu0
        %v2230 = vpop.trf.xlu0
        %v2231 = vpop.trf.xlu0
        %v2232 = vpop.trf.xlu0
        %v2233 = vpop.trf.xlu0
        %v2234 = vpop.trf.xlu0
        %v2235 = vpop.trf.xlu0
        %v2236 = vpop.trf.xlu0
        %v2237 = vpop.trf.xlu0
        %v2238 = vpop.trf.xlu0
        %v2239 = vpop.trf.xlu0
        %v2240 = vpop.trf.xlu0
        %v2241 = vpop.trf.xlu0
        %v2242 = vpop.trf.xlu0
        %v2245 = vcombine.low %v2195, %v2227
        %2247 = vst [vmem:[%s242] sm:$0xff] %v2245
        %s2248 = sand.u32 %s153, 1
        %s2249 = scalar_lea.sflag [#allocation3], %s2248
        %s2250 = sand.u32 %s153, 1
        %s2251 = smul.addr %s2250, 8
        %s2252 = scalar_lea.vmem [#allocation2], %s2251
        // Predicated region
        $region41: #{voxel_feature_net_forward.1} parent=39 // pred_check
          %p2253 = pneg %p163
        $region42: #{voxel_feature_net_forward.1} parent=39 // pred_check_branch
          %2255 = sbr.rel (%p2253) target = $region44
        $region43: #{voxel_feature_net_forward.1} parent=39 // pred_region
          %s2256 = smul.u32 2, %s24
          %s2258 = ssub.s32 128, 128
          %2259 = vsyncadd %s2249, %s2258
          %s2260 = smul.addr %s23, 2
          %s2261 = sadd.s32 %s2256, %s2260
          %s2262 = smul.addr %s2261, 64
          %s2263 = scalar_lea.hbm %s5, %s2262
          %s2265 = sshll.u32 %s2252, 4
          %s2266 = int_to_ptr.vmem [resolvable:$true] %s2265
          %2268 = dma.vmem_to_hbm [thread:$0]  %s2266, 128, %s2263, %s2249
        $region44: #{voxel_feature_net_forward.1} parent=39 // pred_fallthru
          _
      $region40: #{voxel_feature_net_forward.1} parent=5 // pred_fallthru
        _
      %p2269 = scmp.le.s32.totalorder 2, %s14
      // Predicated region
      $region45: #{voxel_feature_net_forward.1} parent=5 // pred_check
        %p2270 = pneg %p2269
      $region46: #{voxel_feature_net_forward.1} parent=5 // pred_check_branch
        %2272 = sbr.rel (%p2270) target = $region48
      $region47: #{voxel_feature_net_forward.1} parent=5 // pred_region
        %s2273 = ssub.s32 %s14, 2
        // Predicated region
        $region49: #{voxel_feature_net_forward.1} parent=47 // pred_check
          %p2274 = pneg %p169
        $region50: #{voxel_feature_net_forward.1} parent=47 // pred_check_branch
          %2276 = sbr.rel (%p2274) target = $region52
        $region51: #{voxel_feature_net_forward.1} parent=47 // pred_region
          %s2277 = sand.u32 %s154, 1
          %s2278 = scalar_lea.sflag [#allocation3], %s2277
          %s2279 = sand.u32 %s154, 1
          %s2280 = smul.addr %s2279, 8
          %s2281 = scalar_lea.vmem [#allocation2], %s2280
          %2282 = dma.done %s2278, 128
        $region52: #{voxel_feature_net_forward.1} parent=47 // pred_fallthru
          _
      $region48: #{voxel_feature_net_forward.1} parent=5 // pred_fallthru
        _
    $region6: #{voxel_feature_net_forward.1} parent=1 // loop_footer
      %s18 = sadd.s32 1, %s14
    $region7: #{voxel_feature_net_forward.1} parent=1 // loop_footer_branch
      %13 = sbr.rel target = $region3
    $region8: #{voxel_feature_net_forward.1} parent=1 // loop_exit
      _
    %2283 = vsyncpa [#allocation3], 1
    %s2284 = scalar_lea.sflag [#allocation3], 1
    %2285 = vsyncpa %s2284, 1

</llo_original>
